<compile_context>
chip_gen: v7x
topology: tpu7x:2x2x1
jax: 0.10.0
libtpu: 0.0.40
codegen_flags: <defaults>
</compile_context>

<pallas_src>
import functools

import jax
import jax.numpy as jnp
from jax.experimental import pallas as pl
from jax.experimental.pallas import tpu as pltpu

LEAKY_SLOPE = 0.01            # nn.LeakyReLU default
BN_EPS = 1e-5                 # nn.BatchNorm2d default
VMEM_LIMIT = 48 * 1024 * 1024
_VMEM_BLOCK_BUDGET = 40 * 1024 * 1024


# ---------------------------------------------------------------------------
# Kernel 1: stride-1 KHxKW conv (banded-weight matmuls, bf16 in / f32 acc)
#           + per-image BN partial statistics.  One image per grid step.
# ---------------------------------------------------------------------------
def _conv_stats_kernel(x_ref, w_ref, o_ref, st_ref, *, kh, c, ho, two, cout,
                       n_wt, s):
    lane = two * cout
    ssum = jnp.zeros((1, lane), jnp.float32)
    sssq = jnp.zeros((1, lane), jnp.float32)
    for t in range(n_wt):                              # static width tiles
        col0 = t * two * c
        acc = jnp.zeros((ho, lane), jnp.float32)
        for dy in range(kh):                           # KH banded matmuls
            slab = x_ref[0, dy:dy + ho, col0:col0 + s]          # (ho, S) bf16
            acc = acc + jnp.dot(slab, w_ref[dy],
                                preferred_element_type=jnp.float32)
        # lane-dense folded NHWC store: lane index = ox*cout + co
        o_ref[0, :, t * lane:(t + 1) * lane] = acc.astype(o_ref.dtype)
        ssum = ssum + jnp.sum(acc, axis=0, keepdims=True)
        sssq = sssq + jnp.sum(acc * acc, axis=0, keepdims=True)
    st_ref[0, 0:1, :] = ssum                           # row 0: per-(fold,ch) sum
    st_ref[0, 1:2, :] = sssq                           # row 1: per-(fold,ch) sum sq


# ---------------------------------------------------------------------------
# Kernel 2: BN normalize (precomputed scale/shift) + LeakyReLU, lane-dense,
#           in place over the conv output.
# ---------------------------------------------------------------------------
def _bn_act_kernel(x_ref, scale_ref, shift_ref, o_ref):
    y = x_ref[...].astype(jnp.float32) * scale_ref[...] + shift_ref[...]
    o_ref[...] = jnp.where(y >= 0, y, LEAKY_SLOPE * y).astype(o_ref.dtype)


# ---------------------------------------------------------------------------
# Helpers
# ---------------------------------------------------------------------------
def _pick_width_tile(wo, c, cout, kh, kw):
    """Largest divisor of Wo keeping Two*Cout <= 512 lanes and the banded weight small."""
    best = 1
    for t in range(1, wo + 1):
        if wo % t:
            continue
        lanes = t * cout
        w_bytes = kh * (t + kw - 1) * c * lanes * 2
        if t > 1 and (lanes > 512 or w_bytes > (4 << 20)):
            continue
        best = t
    return best


def _banded_weight(w_eff, two, dtype):
    """B[dy, (j+dx)*C + c, j*Cout + co] = W[dy, dx, c, co]; zeros elsewhere."""
    kh, kw, c, cout = w_eff.shape
    s = (two + kw - 1) * c
    wr = w_eff.reshape(kh, kw * c, cout)
    b = jnp.zeros((kh, s, two * cout), w_eff.dtype)
    for j in range(two):
        b = b.at[:, j * c:(j + kw) * c, j * cout:(j + 1) * cout].set(wr)
    return b.astype(dtype)


def _reflect_pad(x_nhwc):
    return jnp.pad(x_nhwc, ((0, 0), (1, 1), (1, 1), (0, 0)), mode="reflect")


def _space_to_depth2(xp):
    """(N, 2i+a, 2j+b, c) -> (N, i, j, a*2C + b*C + c)."""
    n, hp, wp, c = xp.shape
    x = xp.reshape(n, hp // 2, 2, wp // 2, 2, c)
    x = jnp.transpose(x, (0, 1, 3, 2, 4, 5))
    return x.reshape(n, hp // 2, wp // 2, 4 * c)


def _stride2_weight(wt):
    """(3,3,Cin,Cout) 3x3/s2 weight -> exact 2x2/s1 weight over the s2d input."""
    cin, cout = wt.shape[2], wt.shape[3]
    w2 = jnp.zeros((2, 2, 2, 2, cin, cout), wt.dtype)
    for gy in range(2):
        for a in range(2):
            dy = 2 * gy + a
            if dy > 2:
                continue
            for gx in range(2):
                for b in range(2):
                    dx = 2 * gx + b
                    if dx > 2:
                        continue
                    w2 = w2.at[gy, gx, a, b].set(wt[dy, dx])
    return w2.reshape(2, 2, 4 * cin, cout)


def _vmem_block_bytes(hq, wqc, ho, wo, cout, kh, s, two):
    x_b = hq * wqc * 2                 # bf16 input block (double-buffered)
    o_b = ho * wo * cout * 2           # bf16 output block (double-buffered)
    w_b = kh * s * two * cout * 2      # resident banded weight
    a_b = ho * two * cout * 4          # f32 accumulator
    return 2 * x_b + 2 * o_b + w_b + a_b


# ---------------------------------------------------------------------------
# One (already padded / stride-1-rewritten) conv + BatchNorm(train) + LeakyReLU
# xq: (N, Hq, Wq, C) bf16 padded input;  w_eff: (KH, KW, C, Cout) f32
# ---------------------------------------------------------------------------
def _conv_bn_act(xq, w_eff, gamma, beta):
    n, hq, wq, c = xq.shape
    kh, kw, _, cout = w_eff.shape
    ho, wo = hq - kh + 1, wq - kw + 1
    two = _pick_width_tile(wo, c, cout, kh, kw)
    n_wt = wo // two
    s = (two + kw - 1) * c
    lane = two * cout

    if _vmem_block_bytes(hq, wq * c, ho, wo, cout, kh, s, two) > _VMEM_BLOCK_BUDGET:
        raise ValueError("image too large for whole-image blocks; "
                         "needs a height-banded grid (see TODO).")

    wb = _banded_weight(w_eff, two, jnp.bfloat16)      # (KH, S, Two*Cout)
    x2 = xq.reshape(n, hq, wq * c)                     # free reshape, lane = Wq*C

    conv_out, stats = pl.pallas_call(
        functools.partial(_conv_stats_kernel, kh=kh, c=c, ho=ho, two=two,
                          cout=cout, n_wt=n_wt, s=s),
        out_shape=(
            jax.ShapeDtypeStruct((n, ho, wo * cout), jnp.bfloat16),
            jax.ShapeDtypeStruct((n, 2, lane), jnp.float32),
        ),
        grid_spec=pltpu.PrefetchScalarGridSpec(
            num_scalar_prefetch=0,
            grid=(n,),
            in_specs=[
                pl.BlockSpec((1, hq, wq * c), lambda i: (i, 0, 0)),
                pl.BlockSpec((kh, s, lane), lambda i: (0, 0, 0)),
            ],
            out_specs=[
                pl.BlockSpec((1, ho, wo * cout), lambda i: (i, 0, 0)),
                pl.BlockSpec((1, 2, lane), lambda i: (i, 0, 0)),
            ],
        ),
        compiler_params=pltpu.CompilerParams(
            dimension_semantics=("parallel",),
            vmem_limit_bytes=VMEM_LIMIT,
        ),
    )(x2, wb)

    # --- BatchNorm2d training-mode batch statistics (biased variance). -------
    # (conv bias is dropped: BN immediately after conv is invariant to it.)
    cnt = n * ho * wo
    csum = stats[:, 0, :].reshape(n, two, cout).sum(axis=(0, 1))
    cssq = stats[:, 1, :].reshape(n, two, cout).sum(axis=(0, 1))
    mean = csum / cnt
    var = jnp.maximum(cssq / cnt - mean * mean, 0.0)
    scale = gamma.astype(jnp.float32) * jax.lax.rsqrt(var + BN_EPS)
    shift = beta.astype(jnp.float32) - mean * scale
    scale_l = jnp.tile(scale, wo).reshape(1, 1, wo * cout)
    shift_l = jnp.tile(shift, wo).reshape(1, 1, wo * cout)

    act = pl.pallas_call(
        _bn_act_kernel,
        out_shape=jax.ShapeDtypeStruct((n, ho, wo * cout), jnp.bfloat16),
        grid_spec=pltpu.PrefetchScalarGridSpec(
            num_scalar_prefetch=0,
            grid=(n,),
            in_specs=[
                pl.BlockSpec((1, ho, wo * cout), lambda i: (i, 0, 0)),
                pl.BlockSpec((1, 1, wo * cout), lambda i: (0, 0, 0)),
                pl.BlockSpec((1, 1, wo * cout), lambda i: (0, 0, 0)),
            ],
            out_specs=pl.BlockSpec((1, ho, wo * cout), lambda i: (i, 0, 0)),
        ),
        compiler_params=pltpu.CompilerParams(
            dimension_semantics=("parallel",),
            vmem_limit_bytes=VMEM_LIMIT,
        ),
        input_output_aliases={0: 0},                   # in-place over conv_out
    )(conv_out, scale_l, shift_l)

    return act.reshape(n, ho, wo, cout)                # bf16 NHWC


# ---------------------------------------------------------------------------
# Down_block forward (isNONLocalBlock2D=False), training-mode BN.
# ---------------------------------------------------------------------------
@jax.jit
def down_block(x_nchw, params):
    x = jnp.transpose(x_nchw, (0, 2, 3, 1))            # NCHW -> NHWC
    _, h, w, _ = x.shape
    assert h % 2 == 0 and w % 2 == 0, "even spatial dims required (stride-2 rewrite)"

    # conv1: 3x3 stride-2 reflect pad 1  ==  2x2 stride-1 conv over space-to-depth.
    xq = _space_to_depth2(_reflect_pad(x.astype(jnp.bfloat16)))
    wt1 = jnp.transpose(params["w1"], (2, 3, 1, 0))    # (3,3,Cin,Cout)
    y = _conv_bn_act(xq, _stride2_weight(wt1), params["gamma1"], params["beta1"])

    # conv2: 3x3 stride-1 reflect pad 1.
    yp = _reflect_pad(y)
    wt2 = jnp.transpose(params["w2"], (2, 3, 1, 0))
    y = _conv_bn_act(yp, wt2, params["gamma2"], params["beta2"])

    return jnp.transpose(y, (0, 3, 1, 2)).astype(jnp.float32)   # NHWC -> NCHW


def init_params(key, cin, cout):
    k1, k2, k3, k4 = jax.random.split(key, 4)
    # PyTorch Conv2d layout (Cout, Cin, kh, kw).  Conv biases are kept for interface
    # fidelity but are mathematically redundant in the forward output (BN follows).
    s1 = (2.0 / (9 * cin)) ** 0.5
    s2 = (2.0 / (9 * cout)) ** 0.5
    return {
        "w1": jax.random.normal(k1, (cout, cin, 3, 3), jnp.float32) * s1,
        "b1": jax.random.normal(k2, (cout,), jnp.float32) * 0.01,   # unused (BN-invariant)
        "gamma1": jnp.ones((cout,), jnp.float32),
        "beta1": jnp.zeros((cout,), jnp.float32),
        "w2": jax.random.normal(k3, (cout, cout, 3, 3), jnp.float32) * s2,
        "b2": jax.random.normal(k4, (cout,), jnp.float32) * 0.01,   # unused (BN-invariant)
        "gamma2": jnp.ones((cout,), jnp.float32),
        "beta2": jnp.zeros((cout,), jnp.float32),
    }


if __name__ == "__main__":
    key = jax.random.PRNGKey(0)
    kx, kp = jax.random.split(key)

    N, CIN, H, W = 2, 4, 16, 16
    COUT = 32

    x = jax.random.normal(kx, (N, CIN, H, W), jnp.float32)
    params = init_params(kp, CIN, COUT)

    out = down_block(x, params)
    jax.block_until_ready(out)

    assert out.shape == (N, COUT, H // 2, W // 2), out.shape
    assert jnp.isfinite(out).all()
    print("KERNEL_OK")
</pallas_src>

<mosaic_0001>
module attributes {stable_mosaic.version = 11 : i64} {
  func.func @_bn_act_kernel(%arg0: i32, %arg1: memref<1x8x256xbf16, #tpu.memory_space<vmem>>, %arg2: memref<1x1x256xf32, #tpu.memory_space<vmem>>, %arg3: memref<1x1x256xf32, #tpu.memory_space<vmem>>, %arg4: memref<1x8x256xbf16, #tpu.memory_space<vmem>>) attributes {dimension_semantics = [#tpu.dimension_semantics<parallel>], iteration_bounds = array<i64: 2>, scalar_prefetch = 0 : i64, scratch_operands = 0 : i64, tpu.core_type = #tpu.core_type<tc>, window_params = [{transform_indices = @transform_0, window_bounds = array<i64: 1, 8, 256>}, {pipeline_mode = #tpu.pipeline_mode<synchronous>, transform_indices = @transform_1, window_bounds = array<i64: 1, 1, 256>}, {pipeline_mode = #tpu.pipeline_mode<synchronous>, transform_indices = @transform_2, window_bounds = array<i64: 1, 1, 256>}, {transform_indices = @transform_3, window_bounds = array<i64: 1, 8, 256>}]} {
    %c0 = arith.constant 0 : index
    %c0_0 = arith.constant 0 : index
    %c0_1 = arith.constant 0 : index
    %0 = vector.load %arg1[%c0, %c0_0, %c0_1] : memref<1x8x256xbf16, #tpu.memory_space<vmem>>, vector<1x8x256xbf16>
    %1 = arith.extf %0 : vector<1x8x256xbf16> to vector<1x8x256xf32>
    %c0_2 = arith.constant 0 : index
    %c0_3 = arith.constant 0 : index
    %c0_4 = arith.constant 0 : index
    %2 = vector.load %arg2[%c0_2, %c0_3, %c0_4] : memref<1x1x256xf32, #tpu.memory_space<vmem>>, vector<1x1x256xf32>
    %3 = vector.broadcast %2 : vector<1x1x256xf32> to vector<1x8x256xf32>
    %4 = arith.mulf %1, %3 : vector<1x8x256xf32>
    %c0_5 = arith.constant 0 : index
    %c0_6 = arith.constant 0 : index
    %c0_7 = arith.constant 0 : index
    %5 = vector.load %arg3[%c0_5, %c0_6, %c0_7] : memref<1x1x256xf32, #tpu.memory_space<vmem>>, vector<1x1x256xf32>
    %6 = vector.broadcast %5 : vector<1x1x256xf32> to vector<1x8x256xf32>
    %7 = arith.addf %4, %6 : vector<1x8x256xf32>
    %cst = arith.constant 0.000000e+00 : f32
    %8 = vector.broadcast %cst : f32 to vector<1x8x256xf32>
    %9 = arith.cmpf oge, %7, %8 : vector<1x8x256xf32>
    %cst_8 = arith.constant 0.00999999977 : f32
    %10 = vector.broadcast %cst_8 : f32 to vector<1x8x256xf32>
    %11 = arith.mulf %10, %7 : vector<1x8x256xf32>
    %12 = arith.select %9, %7, %11 : vector<1x8x256xi1>, vector<1x8x256xf32>
    %13 = arith.truncf %12 : vector<1x8x256xf32> to vector<1x8x256xbf16>
    %c0_9 = arith.constant 0 : index
    %c0_10 = arith.constant 0 : index
    %c0_11 = arith.constant 0 : index
    %14 = vector.load %arg4[%c0_9, %c0_10, %c0_11] : memref<1x8x256xbf16, #tpu.memory_space<vmem>>, vector<1x8x256xbf16>
    tpu.vector_store %arg4[%c0_9, %c0_10, %c0_11], %13 {strides = array<i32>} : memref<1x8x256xbf16, #tpu.memory_space<vmem>>, vector<1x8x256xbf16>,
    return
  }
  func.func @transform_0(%arg0: i32) -> (i32, i32, i32) {
    %c0_i32 = arith.constant 0 : i32
    %c0_i32_0 = arith.constant 0 : i32
    %c0_i32_1 = arith.constant 0 : i32
    return %arg0, %c0_i32, %c0_i32_0 : i32, i32, i32
  }
  func.func @transform_1(%arg0: i32) -> (i32, i32, i32) {
    %c0_i32 = arith.constant 0 : i32
    %c0_i32_0 = arith.constant 0 : i32
    %c0_i32_1 = arith.constant 0 : i32
    %c0_i32_2 = arith.constant 0 : i32
    return %c0_i32, %c0_i32_0, %c0_i32_1 : i32, i32, i32
  }
  func.func @transform_2(%arg0: i32) -> (i32, i32, i32) {
    %c0_i32 = arith.constant 0 : i32
    %c0_i32_0 = arith.constant 0 : i32
    %c0_i32_1 = arith.constant 0 : i32
    %c0_i32_2 = arith.constant 0 : i32
    return %c0_i32, %c0_i32_0, %c0_i32_1 : i32, i32, i32
  }
  func.func @transform_3(%arg0: i32) -> (i32, i32, i32) {
    %c0_i32 = arith.constant 0 : i32
    %c0_i32_0 = arith.constant 0 : i32
    %c0_i32_1 = arith.constant 0 : i32
    return %arg0, %c0_i32, %c0_i32_0 : i32, i32, i32
  }
}

module attributes {stable_mosaic.version = 11 : i64} {
  func.func @_conv_stats_kernel(%arg0: i32, %arg1: memref<1x9x144xbf16, #tpu.memory_space<vmem>>, %arg2: memref<2x144x256xbf16, #tpu.memory_space<vmem>>, %arg3: memref<1x8x256xbf16, #tpu.memory_space<vmem>>, %arg4: memref<1x2x256xf32, #tpu.memory_space<vmem>>) attributes {dimension_semantics = [#tpu.dimension_semantics<parallel>], iteration_bounds = array<i64: 2>, scalar_prefetch = 0 : i64, scratch_operands = 0 : i64, tpu.core_type = #tpu.core_type<tc>, window_params = [{transform_indices = @transform_0, window_bounds = array<i64: 1, 9, 144>}, {pipeline_mode = #tpu.pipeline_mode<synchronous>, transform_indices = @transform_1, window_bounds = array<i64: 2, 144, 256>}, {transform_indices = @transform_2, window_bounds = array<i64: 1, 8, 256>}, {transform_indices = @transform_3, window_bounds = array<i64: 1, 2, 256>}]} {
    %cst = arith.constant 0.000000e+00 : f32
    %0 = vector.broadcast %cst : f32 to vector<1x256xf32>
    %cst_0 = arith.constant 0.000000e+00 : f32
    %1 = vector.broadcast %cst_0 : f32 to vector<1x256xf32>
    %cst_1 = arith.constant 0.000000e+00 : f32
    %2 = vector.broadcast %cst_1 : f32 to vector<8x256xf32>
    %c0 = arith.constant 0 : index
    %c0_2 = arith.constant 0 : index
    %c0_3 = arith.constant 0 : index
    %3 = vector.load %arg1[%c0, %c0_2, %c0_3] : memref<1x9x144xbf16, #tpu.memory_space<vmem>>, vector<1x8x144xbf16>
    %4 = vector.shape_cast %3 : vector<1x8x144xbf16> to vector<8x144xbf16>
    %c0_4 = arith.constant 0 : index
    %c0_5 = arith.constant 0 : index
    %c0_6 = arith.constant 0 : index
    %5 = vector.load %arg2[%c0_4, %c0_5, %c0_6] : memref<2x144x256xbf16, #tpu.memory_space<vmem>>, vector<1x144x256xbf16>
    %6 = vector.shape_cast %5 : vector<1x144x256xbf16> to vector<144x256xbf16>
    %cst_7 = arith.constant dense<0.000000e+00> : vector<8x256xf32>
    %7 = tpu.matmul %4, %6, %cst_7 {dimension_numbers = #tpu.dot_dimension_numbers<[1], [0], [0], [1], [0, 0, 1, 1], [], []>} : vector<8x144xbf16>, vector<144x256xbf16>, vector<8x256xf32> -> vector<8x256xf32>
    %8 = arith.addf %2, %7 : vector<8x256xf32>
    %c0_8 = arith.constant 0 : index
    %c1 = arith.constant 1 : index
    %c0_9 = arith.constant 0 : index
    %9 = vector.load %arg1[%c0_8, %c1, %c0_9] : memref<1x9x144xbf16, #tpu.memory_space<vmem>>, vector<1x8x144xbf16>
    %10 = vector.shape_cast %9 : vector<1x8x144xbf16> to vector<8x144xbf16>
    %c1_10 = arith.constant 1 : index
    %c0_11 = arith.constant 0 : index
    %c0_12 = arith.constant 0 : index
    %11 = vector.load %arg2[%c1_10, %c0_11, %c0_12] : memref<2x144x256xbf16, #tpu.memory_space<vmem>>, vector<1x144x256xbf16>
    %12 = vector.shape_cast %11 : vector<1x144x256xbf16> to vector<144x256xbf16>
    %cst_13 = arith.constant dense<0.000000e+00> : vector<8x256xf32>
    %13 = tpu.matmul %10, %12, %cst_13 {dimension_numbers = #tpu.dot_dimension_numbers<[1], [0], [0], [1], [0, 0, 1, 1], [], []>} : vector<8x144xbf16>, vector<144x256xbf16>, vector<8x256xf32> -> vector<8x256xf32>
    %14 = arith.addf %8, %13 : vector<8x256xf32>
    %15 = arith.truncf %14 : vector<8x256xf32> to vector<8x256xbf16>
    %c0_14 = arith.constant 0 : index
    %c0_15 = arith.constant 0 : index
    %c0_16 = arith.constant 0 : index
    %16 = vector.load %arg3[%c0_14, %c0_15, %c0_16] : memref<1x8x256xbf16, #tpu.memory_space<vmem>>, vector<1x8x256xbf16>
    %17 = vector.shape_cast %16 : vector<1x8x256xbf16> to vector<8x256xbf16>
    %18 = vector.shape_cast %15 : vector<8x256xbf16> to vector<1x8x256xbf16>
    tpu.vector_store %arg3[%c0_14, %c0_15, %c0_16], %18 {strides = array<i32>} : memref<1x8x256xbf16, #tpu.memory_space<vmem>>, vector<1x8x256xbf16>,
    %cst_17 = arith.constant dense<0.000000e+00> : vector<256xf32>
    %19 = vector.multi_reduction <add>, %14, %cst_17 [0] : vector<8x256xf32> to vector<256xf32>
    %20 = vector.shape_cast %19 : vector<256xf32> to vector<1x256xf32>
    %21 = arith.addf %0, %20 : vector<1x256xf32>
    %22 = arith.mulf %14, %14 : vector<8x256xf32>
    %cst_18 = arith.constant dense<0.000000e+00> : vector<256xf32>
    %23 = vector.multi_reduction <add>, %22, %cst_18 [0] : vector<8x256xf32> to vector<256xf32>
    %24 = vector.shape_cast %23 : vector<256xf32> to vector<1x256xf32>
    %25 = arith.addf %1, %24 : vector<1x256xf32>
    %c0_19 = arith.constant 0 : index
    %c0_20 = arith.constant 0 : index
    %c0_21 = arith.constant 0 : index
    %26 = vector.load %arg4[%c0_19, %c0_20, %c0_21] : memref<1x2x256xf32, #tpu.memory_space<vmem>>, vector<1x1x256xf32>
    %27 = vector.shape_cast %26 : vector<1x1x256xf32> to vector<1x256xf32>
    %28 = vector.shape_cast %21 : vector<1x256xf32> to vector<1x1x256xf32>
    tpu.vector_store %arg4[%c0_19, %c0_20, %c0_21], %28 {strides = array<i32>} : memref<1x2x256xf32, #tpu.memory_space<vmem>>, vector<1x1x256xf32>,
    %c0_22 = arith.constant 0 : index
    %c1_23 = arith.constant 1 : index
    %c0_24 = arith.constant 0 : index
    %29 = vector.load %arg4[%c0_22, %c1_23, %c0_24] : memref<1x2x256xf32, #tpu.memory_space<vmem>>, vector<1x1x256xf32>
    %30 = vector.shape_cast %29 : vector<1x1x256xf32> to vector<1x256xf32>
    %31 = vector.shape_cast %25 : vector<1x256xf32> to vector<1x1x256xf32>
    tpu.vector_store %arg4[%c0_22, %c1_23, %c0_24], %31 {strides = array<i32>} : memref<1x2x256xf32, #tpu.memory_space<vmem>>, vector<1x1x256xf32>,
    return
  }
  func.func @transform_0(%arg0: i32) -> (i32, i32, i32) {
    %c0_i32 = arith.constant 0 : i32
    %c0_i32_0 = arith.constant 0 : i32
    %c0_i32_1 = arith.constant 0 : i32
    return %arg0, %c0_i32, %c0_i32_0 : i32, i32, i32
  }
  func.func @transform_1(%arg0: i32) -> (i32, i32, i32) {
    %c0_i32 = arith.constant 0 : i32
    %c0_i32_0 = arith.constant 0 : i32
    %c0_i32_1 = arith.constant 0 : i32
    %c0_i32_2 = arith.constant 0 : i32
    return %c0_i32, %c0_i32_0, %c0_i32_1 : i32, i32, i32
  }
  func.func @transform_2(%arg0: i32) -> (i32, i32, i32) {
    %c0_i32 = arith.constant 0 : i32
    %c0_i32_0 = arith.constant 0 : i32
    %c0_i32_1 = arith.constant 0 : i32
    return %arg0, %c0_i32, %c0_i32_0 : i32, i32, i32
  }
  func.func @transform_3(%arg0: i32) -> (i32, i32, i32) {
    %c0_i32 = arith.constant 0 : i32
    %c0_i32_0 = arith.constant 0 : i32
    %c0_i32_1 = arith.constant 0 : i32
    return %arg0, %c0_i32, %c0_i32_0 : i32, i32, i32
  }
}

module attributes {stable_mosaic.version = 11 : i64} {
  func.func @_conv_stats_kernel(%arg0: i32, %arg1: memref<1x10x320xbf16, #tpu.memory_space<vmem>>, %arg2: memref<3x320x256xbf16, #tpu.memory_space<vmem>>, %arg3: memref<1x8x256xbf16, #tpu.memory_space<vmem>>, %arg4: memref<1x2x256xf32, #tpu.memory_space<vmem>>) attributes {dimension_semantics = [#tpu.dimension_semantics<parallel>], iteration_bounds = array<i64: 2>, scalar_prefetch = 0 : i64, scratch_operands = 0 : i64, tpu.core_type = #tpu.core_type<tc>, window_params = [{transform_indices = @transform_0, window_bounds = array<i64: 1, 10, 320>}, {pipeline_mode = #tpu.pipeline_mode<synchronous>, transform_indices = @transform_1, window_bounds = array<i64: 3, 320, 256>}, {transform_indices = @transform_2, window_bounds = array<i64: 1, 8, 256>}, {transform_indices = @transform_3, window_bounds = array<i64: 1, 2, 256>}]} {
    %cst = arith.constant 0.000000e+00 : f32
    %0 = vector.broadcast %cst : f32 to vector<1x256xf32>
    %cst_0 = arith.constant 0.000000e+00 : f32
    %1 = vector.broadcast %cst_0 : f32 to vector<1x256xf32>
    %cst_1 = arith.constant 0.000000e+00 : f32
    %2 = vector.broadcast %cst_1 : f32 to vector<8x256xf32>
    %c0 = arith.constant 0 : index
    %c0_2 = arith.constant 0 : index
    %c0_3 = arith.constant 0 : index
    %3 = vector.load %arg1[%c0, %c0_2, %c0_3] : memref<1x10x320xbf16, #tpu.memory_space<vmem>>, vector<1x8x320xbf16>
    %4 = vector.shape_cast %3 : vector<1x8x320xbf16> to vector<8x320xbf16>
    %c0_4 = arith.constant 0 : index
    %c0_5 = arith.constant 0 : index
    %c0_6 = arith.constant 0 : index
    %5 = vector.load %arg2[%c0_4, %c0_5, %c0_6] : memref<3x320x256xbf16, #tpu.memory_space<vmem>>, vector<1x320x256xbf16>
    %6 = vector.shape_cast %5 : vector<1x320x256xbf16> to vector<320x256xbf16>
    %cst_7 = arith.constant dense<0.000000e+00> : vector<8x256xf32>
    %7 = tpu.matmul %4, %6, %cst_7 {dimension_numbers = #tpu.dot_dimension_numbers<[1], [0], [0], [1], [0, 0, 1, 1], [], []>} : vector<8x320xbf16>, vector<320x256xbf16>, vector<8x256xf32> -> vector<8x256xf32>
    %8 = arith.addf %2, %7 : vector<8x256xf32>
    %c0_8 = arith.constant 0 : index
    %c1 = arith.constant 1 : index
    %c0_9 = arith.constant 0 : index
    %9 = vector.load %arg1[%c0_8, %c1, %c0_9] : memref<1x10x320xbf16, #tpu.memory_space<vmem>>, vector<1x8x320xbf16>
    %10 = vector.shape_cast %9 : vector<1x8x320xbf16> to vector<8x320xbf16>
    %c1_10 = arith.constant 1 : index
    %c0_11 = arith.constant 0 : index
    %c0_12 = arith.constant 0 : index
    %11 = vector.load %arg2[%c1_10, %c0_11, %c0_12] : memref<3x320x256xbf16, #tpu.memory_space<vmem>>, vector<1x320x256xbf16>
    %12 = vector.shape_cast %11 : vector<1x320x256xbf16> to vector<320x256xbf16>
    %cst_13 = arith.constant dense<0.000000e+00> : vector<8x256xf32>
    %13 = tpu.matmul %10, %12, %cst_13 {dimension_numbers = #tpu.dot_dimension_numbers<[1], [0], [0], [1], [0, 0, 1, 1], [], []>} : vector<8x320xbf16>, vector<320x256xbf16>, vector<8x256xf32> -> vector<8x256xf32>
    %14 = arith.addf %8, %13 : vector<8x256xf32>
    %c0_14 = arith.constant 0 : index
    %c2 = arith.constant 2 : index
    %c0_15 = arith.constant 0 : index
    %15 = vector.load %arg1[%c0_14, %c2, %c0_15] : memref<1x10x320xbf16, #tpu.memory_space<vmem>>, vector<1x8x320xbf16>
    %16 = vector.shape_cast %15 : vector<1x8x320xbf16> to vector<8x320xbf16>
    %c2_16 = arith.constant 2 : index
    %c0_17 = arith.constant 0 : index
    %c0_18 = arith.constant 0 : index
    %17 = vector.load %arg2[%c2_16, %c0_17, %c0_18] : memref<3x320x256xbf16, #tpu.memory_space<vmem>>, vector<1x320x256xbf16>
    %18 = vector.shape_cast %17 : vector<1x320x256xbf16> to vector<320x256xbf16>
    %cst_19 = arith.constant dense<0.000000e+00> : vector<8x256xf32>
    %19 = tpu.matmul %16, %18, %cst_19 {dimension_numbers = #tpu.dot_dimension_numbers<[1], [0], [0], [1], [0, 0, 1, 1], [], []>} : vector<8x320xbf16>, vector<320x256xbf16>, vector<8x256xf32> -> vector<8x256xf32>
    %20 = arith.addf %14, %19 : vector<8x256xf32>
    %21 = arith.truncf %20 : vector<8x256xf32> to vector<8x256xbf16>
    %c0_20 = arith.constant 0 : index
    %c0_21 = arith.constant 0 : index
    %c0_22 = arith.constant 0 : index
    %22 = vector.load %arg3[%c0_20, %c0_21, %c0_22] : memref<1x8x256xbf16, #tpu.memory_space<vmem>>, vector<1x8x256xbf16>
    %23 = vector.shape_cast %22 : vector<1x8x256xbf16> to vector<8x256xbf16>
    %24 = vector.shape_cast %21 : vector<8x256xbf16> to vector<1x8x256xbf16>
    tpu.vector_store %arg3[%c0_20, %c0_21, %c0_22], %24 {strides = array<i32>} : memref<1x8x256xbf16, #tpu.memory_space<vmem>>, vector<1x8x256xbf16>,
    %cst_23 = arith.constant dense<0.000000e+00> : vector<256xf32>
    %25 = vector.multi_reduction <add>, %20, %cst_23 [0] : vector<8x256xf32> to vector<256xf32>
    %26 = vector.shape_cast %25 : vector<256xf32> to vector<1x256xf32>
    %27 = arith.addf %0, %26 : vector<1x256xf32>
    %28 = arith.mulf %20, %20 : vector<8x256xf32>
    %cst_24 = arith.constant dense<0.000000e+00> : vector<256xf32>
    %29 = vector.multi_reduction <add>, %28, %cst_24 [0] : vector<8x256xf32> to vector<256xf32>
    %30 = vector.shape_cast %29 : vector<256xf32> to vector<1x256xf32>
    %31 = arith.addf %1, %30 : vector<1x256xf32>
    %c0_25 = arith.constant 0 : index
    %c0_26 = arith.constant 0 : index
    %c0_27 = arith.constant 0 : index
    %32 = vector.load %arg4[%c0_25, %c0_26, %c0_27] : memref<1x2x256xf32, #tpu.memory_space<vmem>>, vector<1x1x256xf32>
    %33 = vector.shape_cast %32 : vector<1x1x256xf32> to vector<1x256xf32>
    %34 = vector.shape_cast %27 : vector<1x256xf32> to vector<1x1x256xf32>
    tpu.vector_store %arg4[%c0_25, %c0_26, %c0_27], %34 {strides = array<i32>} : memref<1x2x256xf32, #tpu.memory_space<vmem>>, vector<1x1x256xf32>,
    %c0_28 = arith.constant 0 : index
    %c1_29 = arith.constant 1 : index
    %c0_30 = arith.constant 0 : index
    %35 = vector.load %arg4[%c0_28, %c1_29, %c0_30] : memref<1x2x256xf32, #tpu.memory_space<vmem>>, vector<1x1x256xf32>
    %36 = vector.shape_cast %35 : vector<1x1x256xf32> to vector<1x256xf32>
    %37 = vector.shape_cast %31 : vector<1x256xf32> to vector<1x1x256xf32>
    tpu.vector_store %arg4[%c0_28, %c1_29, %c0_30], %37 {strides = array<i32>} : memref<1x2x256xf32, #tpu.memory_space<vmem>>, vector<1x1x256xf32>,
    return
  }
  func.func @transform_0(%arg0: i32) -> (i32, i32, i32) {
    %c0_i32 = arith.constant 0 : i32
    %c0_i32_0 = arith.constant 0 : i32
    %c0_i32_1 = arith.constant 0 : i32
    return %arg0, %c0_i32, %c0_i32_0 : i32, i32, i32
  }
  func.func @transform_1(%arg0: i32) -> (i32, i32, i32) {
    %c0_i32 = arith.constant 0 : i32
    %c0_i32_0 = arith.constant 0 : i32
    %c0_i32_1 = arith.constant 0 : i32
    %c0_i32_2 = arith.constant 0 : i32
    return %c0_i32, %c0_i32_0, %c0_i32_1 : i32, i32, i32
  }
  func.func @transform_2(%arg0: i32) -> (i32, i32, i32) {
    %c0_i32 = arith.constant 0 : i32
    %c0_i32_0 = arith.constant 0 : i32
    %c0_i32_1 = arith.constant 0 : i32
    return %arg0, %c0_i32, %c0_i32_0 : i32, i32, i32
  }
  func.func @transform_3(%arg0: i32) -> (i32, i32, i32) {
    %c0_i32 = arith.constant 0 : i32
    %c0_i32_0 = arith.constant 0 : i32
    %c0_i32_1 = arith.constant 0 : i32
    return %arg0, %c0_i32, %c0_i32_0 : i32, i32, i32
  }
}

</mosaic_0001>

<llo_original>
// kernel: tile.28
$region0: #{tile.28}
  #allocation0 [shape = 's32[1]{0}', space=sflag, size = 0x4, scoped, tag = 'scoped memory for tile.28']
  %s0 = inlined_call_operand.vmem [shape: f32[32], index: 0, kind: input, shape index: {}]
  %s1 = inlined_call_operand.vmem [shape: f32[8,32], index: 1, kind: output, shape index: {}]
  // Predicated region
  $region2: #{tile.28} parent=0 // pred_check
    _
  $region3: #{tile.28} parent=0 // pred_check_branch
    %3 = sbr.rel (0) target = $region5
  $region4: #{tile.28} parent=0 // pred_region
    _
  $region5: #{tile.28} parent=0 // pred_fallthru
    _
  %v4 = vld [vmem:[%s0] ss:$0 sm:$0xff]
  %5 = vst [vmem:[%s1] sm:$0xff] %v4

// kernel: tile.29
$region0: #{tile.29}
  %s0 = inlined_call_operand.vmem [shape: f32[8,32], index: 0, kind: input, shape index: {}]
  %s1 = inlined_call_operand.vmem [shape: f32[1,1,256], index: 1, kind: output, shape index: {}]
  $region1: #{tile.29} parent=0
    #allocation0 [shape = 'u8[8192]{0}', space=vmem, size = 0x2000, scoped, tag = 'scoped mem for output reshape']
    %s2 = smov 3
    %v3 = vld [vmem:[%s0] ss:$4 sm:%s2]
    %vm4 = vcmask 261120
    %5 = vst.msk [vmem:[#allocation0] ss:$8 sm:$0x3] %vm4, %v3
    %s6 = scalar_lea.vmem %s0, 3
    %s7 = smov 3
    %v8 = vld [vmem:[%s6] ss:$4 sm:%s7]
    %9 = vrot.lane.b32.xlu0 %v8, 96
    %v10 = vpop.permute.xlu0 %9
    %vm11 = vcmask 1048320
    %12 = vst.msk [vmem:[#allocation0] ss:$8 sm:$0x3] %vm11, %v10
    %s13 = scalar_lea.vmem %s0, 2
    %s14 = smov 3
    %v15 = vld [vmem:[%s13] ss:$4 sm:%s14]
    %16 = vrot.lane.b32.xlu0 %v15, 64
    %v17 = vpop.permute.xlu0 %16
    %vm18 = vcmask 785920
    %19 = vst.msk [vmem:[#allocation0] ss:$8 sm:$0x3] %vm18, %v17
    %s20 = scalar_lea.vmem %s0, 1
    %s21 = smov 3
    %v22 = vld [vmem:[%s20] ss:$4 sm:%s21]
    %23 = vrot.lane.b32.xlu0 %v22, 32
    %v24 = vpop.permute.xlu0 %23
    %vm25 = vcmask 523520
    %26 = vst.msk [vmem:[#allocation0] ss:$8 sm:$0x3] %vm25, %v24
    %s28 = sshllo.u32 0, 1
    %v30 = vld [vmem:[#allocation0] sm:%s28]
    %s31 = sshllo.u32 0, 1
    %32 = vst [vmem:[%s1] sm:%s31] %v30
    %s33 = scalar_lea.vmem [#allocation0], 8
    %v34 = vld [vmem:[%s33] sm:%s28]
    %s35 = sshllo.u32 0, 1
    %s36 = scalar_lea.vmem %s1, 1
    %37 = vst [vmem:[%s36] sm:%s35] %v34

// kernel: down_block.5
$region0: #{down_block.5}
  #allocation0 [shape = 'u32[]', space=smem, size = 0x4, offset = 0x4, fixed_abs, tag = 'smem constant byte address 0x4 - core index']
  #allocation1 [shape = 'u32[144,128]{1,0:T(1,128)}', space=vmem, size = 0x12000, scoped, tag = 'internal scratch']
  %s0 = inlined_call_operand.vmem [shape: bf16[2,8,256], index: 0, kind: input, shape index: {}, may-alias: {0,3}]
  %s1 = inlined_call_operand.vmem [shape: f32[1,1,256], index: 1, kind: input, shape index: {}]
  %s2 = inlined_call_operand.vmem [shape: f32[1,1,256], index: 2, kind: input, shape index: {}]
  %s3 = inlined_call_operand.vmem [shape: bf16[2,8,256], index: 3, kind: output, shape index: {}, may-alias: {0,3}]
  %s4 = sld [smem:[#allocation0]]
  $region45: #{down_block.5} parent=0
    _
  %s6 = ssub.s32 1, %s4
  %s7 = scalar_select 0, %s6, %s4
  loop: start=0, step=1, limit=4
  $region2: #{down_block.5} parent=0 // loop_pre_header
    _
  $region3: #{down_block.5} parent=0 // loop_header
    %s9 = sphi 0, %s13
    %p10 = scmp.ge.s32.totalorder %s9, 4
    %s19 = sphi 0, %s21
    %s22 = sphi 0, %s19
    %s23 = sphi 0, %s22
    %s39 = sphi 0, %s23
    %s43 = sphi 0, %s43
    %s45 = sphi 0, %s43
    %s46 = sphi 0, %s45
    %s60 = sphi 0, %s46
    %s64 = sphi 0, %s64
    %s66 = sphi 0, %s64
    %s67 = sphi 0, %s66
    %s81 = sphi 0, %s67
    %s87 = sphi 0, %s89
    %s90 = sphi 0, %s87
    %s91 = sphi 0, %s90
    %s107 = sphi 0, %s91
  $region4: #{down_block.5} parent=0 // loop_header_branch
    %12 = sbr.rel (%p10) target = $region8
  $region5: #{down_block.5} parent=0 // loop_body
    %s14 = ssub.s32 %s9, 1
    %s15 = ssub.s32 %s9, 2
    %s16 = sadd.s32 %s9, 1
    %s17 = ssub.s32 %s9, %s16
    %p18 = scmp.eq.s32.totalorder %s17, 0
    %s20 = sadd.s32 %s19, 1
    %s21 = scalar_select %p18, %s19, %s20
    %p24 = pneg %p18
    %p25 = scmp.eq.s32.totalorder %s9, 1
    %p26 = por %p24, %p25
    %p27 = scmp.ne.s32.totalorder %s19, %s22
    %p28 = scmp.eq.s32.totalorder %s9, 0
    %p29 = por %p27, %p28
    %p30 = scmp.ne.s32.totalorder %s19, %s22
    %p31 = scmp.eq.s32.totalorder %s14, 1
    %p32 = por %p30, %p31
    %p33 = scmp.ne.s32.totalorder %s22, %s23
    %p34 = scmp.eq.s32.totalorder %s14, 0
    %p35 = por %p33, %p34
    %p36 = scmp.ne.s32.totalorder %s22, %s23
    %p37 = scmp.eq.s32.totalorder %s15, 1
    %p38 = por %p36, %p37
    %p40 = scmp.ne.s32.totalorder %s23, %s39
    %p41 = scmp.eq.s32.totalorder %s15, 0
    %p42 = por %p40, %p41
    %s44 = sadd.s32 %s43, 1
    %p47 = scmp.eq.s32.totalorder %s9, 1
    %p48 = scmp.ne.s32.totalorder %s43, %s45
    %p49 = scmp.eq.s32.totalorder %s9, 0
    %p50 = por %p48, %p49
    %p51 = scmp.ne.s32.totalorder %s43, %s45
    %p52 = scmp.eq.s32.totalorder %s14, 1
    %p53 = por %p51, %p52
    %p54 = scmp.ne.s32.totalorder %s45, %s46
    %p55 = scmp.eq.s32.totalorder %s14, 0
    %p56 = por %p54, %p55
    %p57 = scmp.ne.s32.totalorder %s45, %s46
    %p58 = scmp.eq.s32.totalorder %s15, 1
    %p59 = por %p57, %p58
    %p61 = scmp.ne.s32.totalorder %s46, %s60
    %p62 = scmp.eq.s32.totalorder %s15, 0
    %p63 = por %p61, %p62
    %s65 = sadd.s32 %s64, 1
    %p68 = scmp.eq.s32.totalorder %s9, 1
    %p69 = scmp.ne.s32.totalorder %s64, %s66
    %p70 = scmp.eq.s32.totalorder %s9, 0
    %p71 = por %p69, %p70
    %p72 = scmp.ne.s32.totalorder %s64, %s66
    %p73 = scmp.eq.s32.totalorder %s14, 1
    %p74 = por %p72, %p73
    %p75 = scmp.ne.s32.totalorder %s66, %s67
    %p76 = scmp.eq.s32.totalorder %s14, 0
    %p77 = por %p75, %p76
    %p78 = scmp.ne.s32.totalorder %s66, %s67
    %p79 = scmp.eq.s32.totalorder %s15, 1
    %p80 = por %p78, %p79
    %p82 = scmp.ne.s32.totalorder %s67, %s81
    %p83 = scmp.eq.s32.totalorder %s15, 0
    %p84 = por %p82, %p83
    %s85 = ssub.s32 %s9, %s16
    %p86 = scmp.eq.s32.totalorder %s85, 0
    %s88 = sadd.s32 %s87, 1
    %s89 = scalar_select %p86, %s87, %s88
    %p92 = pneg %p86
    %p93 = scmp.eq.s32.totalorder %s9, 1
    %p94 = por %p92, %p93
    %p95 = scmp.ne.s32.totalorder %s87, %s90
    %p96 = scmp.eq.s32.totalorder %s9, 0
    %p97 = por %p95, %p96
    %p98 = scmp.ne.s32.totalorder %s87, %s90
    %p99 = scmp.eq.s32.totalorder %s14, 1
    %p100 = por %p98, %p99
    %p101 = scmp.ne.s32.totalorder %s90, %s91
    %p102 = scmp.eq.s32.totalorder %s14, 0
    %p103 = por %p101, %p102
    %p104 = scmp.ne.s32.totalorder %s90, %s91
    %p105 = scmp.eq.s32.totalorder %s15, 1
    %p106 = por %p104, %p105
    %p108 = scmp.ne.s32.totalorder %s91, %s107
    %p109 = scmp.eq.s32.totalorder %s15, 0
    %p110 = por %p108, %p109
    %p111 = scmp.le.s32.totalorder 1, %s9
    %p112 = scmp.lt.s32.totalorder %s9, 3
    %p113 = pnand %p111, %p112
    %p114 = pneg %p113
    // Predicated region
    $region9: #{down_block.5} parent=5 // pred_check
      _
    $region10: #{down_block.5} parent=5 // pred_check_branch
      %116 = sbr.rel (%p113) target = $region12
    $region11: #{down_block.5} parent=5 // pred_region
      %s117 = ssub.s32 %s9, 1
      // Predicated region
      $region13: #{down_block.5} parent=11 // pred_check
        %p118 = pneg %p56
      $region14: #{down_block.5} parent=11 // pred_check_branch
        %120 = sbr.rel (%p118) target = $region16
      $region15: #{down_block.5} parent=11 // pred_region
        _
      $region16: #{down_block.5} parent=11 // pred_fallthru
        _
      // Predicated region
      $region17: #{down_block.5} parent=11 // pred_check
        %p121 = pneg %p77
      $region18: #{down_block.5} parent=11 // pred_check_branch
        %123 = sbr.rel (%p121) target = $region20
      $region19: #{down_block.5} parent=11 // pred_region
        _
      $region20: #{down_block.5} parent=11 // pred_fallthru
        _
    $region12: #{down_block.5} parent=5 // pred_fallthru
      _
    %p124 = scmp.lt.s32.totalorder %s9, 2
    // Predicated region
    $region21: #{down_block.5} parent=5 // pred_check
      %p125 = pneg %p124
    $region22: #{down_block.5} parent=5 // pred_check_branch
      %127 = sbr.rel (%p125) target = $region24
    $region23: #{down_block.5} parent=5 // pred_region
      // Predicated region
      $region25: #{down_block.5} parent=23 // pred_check
        %p128 = pneg %p29
      $region26: #{down_block.5} parent=23 // pred_check_branch
        %130 = sbr.rel (%p128) target = $region28
      $region27: #{down_block.5} parent=23 // pred_region
        %p131 = scmp.lt.s32.totalorder %s9, 1
        %s132 = scalar_select %p131, %s9, 1
        %s133 = smul.addr %s132, 2
        %s134 = smul.addr %s133, 4
        %s135 = scalar_lea.vmem %s0, %s134
      $region28: #{down_block.5} parent=23 // pred_fallthru
        _
    $region24: #{down_block.5} parent=5 // pred_fallthru
      _
    %p136 = scmp.le.s32.totalorder 1, %s9
    %p137 = scmp.lt.s32.totalorder %s9, 3
    %p138 = pnand %p136, %p137
    %p139 = pneg %p138
    // Predicated region
    $region29: #{down_block.5} parent=5 // pred_check
      _
    $region30: #{down_block.5} parent=5 // pred_check_branch
      %141 = sbr.rel (%p138) target = $region32
    $region31: #{down_block.5} parent=5 // pred_region
      %s142 = ssub.s32 %s9, 1
      %p143 = scmp.lt.s32.totalorder %s14, 1
      %s144 = scalar_select %p143, %s14, 1
      %s145 = smul.addr %s144, 2
      %s146 = smul.addr %s145, 4
      %s147 = scalar_lea.vmem %s0, %s146
      %p148 = pneg %p35
      %p149 = pneg %p32
      %p150 = pneg %p56
      %p151 = pneg %p53
      %p152 = pneg %p77
      %p153 = pneg %p74
      %p154 = pneg %p103
      %p155 = pneg %p100
      %p156 = scmp.lt.s32.totalorder %s14, 1
      %s157 = scalar_select %p156, %s14, 1
      %s158 = smul.addr %s157, 2
      %s159 = smul.addr %s158, 4
      %s160 = scalar_lea.vmem %s3, %s159
      %p161 = scmp.lt.s32.totalorder %s14, 1
      %s162 = scalar_select %p161, %s14, 1
      %s163 = smul.addr %s162, 2
      %s164 = smul.addr %s163, 4
      %s165 = scalar_lea.vmem %s0, %s164
      %p166 = scmp.lt.s32.totalorder %s14, 1
      %s167 = scalar_select %p166, %s14, 1
      %s168 = smul.addr %s167, 2
      %s169 = smul.addr %s168, 4
      %s170 = scalar_lea.vmem %s3, %s169
      %v171 = vld [vmem:[%s165] sm:$0xff]
      %v172 = vunpack.c.l.bf16 %v171
      %v173 = vunpack.c.h.bf16 %v171
      %v174 = vld [vmem:[%s1] sm:$0x3]
      %v176 = vlaneseq
      %v177 = vshrl.u32 %v176, 7
      %v178 = vsub.s32 0, %v177
      %v179 = vrot.slane %v174, %v178
      %v180 = vlaneseq
      %v181 = vshrl.u32 %v180, 7
      %v182 = vsub.s32 1, %v181
      %v183 = vrot.slane %v174, %v182
      %v186 = vmul.f32 %v172, %v179
      %v187 = vmul.f32 %v173, %v183
      %v188 = vld [vmem:[%s2] sm:$0x3]
      %v190 = vlaneseq
      %v191 = vshrl.u32 %v190, 7
      %v192 = vsub.s32 0, %v191
      %v193 = vrot.slane %v188, %v192
      %v194 = vlaneseq
      %v195 = vshrl.u32 %v194, 7
      %v196 = vsub.s32 1, %v195
      %v197 = vrot.slane %v188, %v196
      %v200 = vadd.f32 %v186, %v193
      %v201 = vadd.f32 %v187, %v197
      %vm202 = vcmp.ge.f32.partialorder %v200, 0.0
      %vm203 = vcmp.ge.f32.partialorder %v201, 0.0
      %v204 = vmul.f32 %v200, 0.01
      %v205 = vmul.f32 %v201, 0.01
      %v206 = vsel %vm202, %v200, %v204
      %v207 = vsel %vm203, %v201, %v205
      %v208 = vpack.c.bf16 %v206, %v206
      %v209 = vpack.c.bf16 %v207, %v207
      %v212 = vunpack.c.l.b16 %v208
      %v213 = vunpack.c.l.b16 %v209
      %v214 = vpack.c.b16 %v213, %v212
      %216 = vst [vmem:[%s170] sm:$0xff] %v214
      %p217 = scmp.lt.s32.totalorder %s14, 1
      %s218 = scalar_select %p217, %s14, 1
      %s219 = smul.addr %s218, 2
      %s220 = smul.addr %s219, 4
      %s221 = scalar_lea.vmem %s3, %s220
      // Predicated region
      $region33: #{down_block.5} parent=31 // pred_check
        %p222 = pneg %p100
      $region34: #{down_block.5} parent=31 // pred_check_branch
        %224 = sbr.rel (%p222) target = $region36
      $region35: #{down_block.5} parent=31 // pred_region
        _
      $region36: #{down_block.5} parent=31 // pred_fallthru
        _
    $region32: #{down_block.5} parent=5 // pred_fallthru
      _
    %p225 = scmp.le.s32.totalorder 2, %s9
    // Predicated region
    $region37: #{down_block.5} parent=5 // pred_check
      %p226 = pneg %p225
    $region38: #{down_block.5} parent=5 // pred_check_branch
      %228 = sbr.rel (%p226) target = $region40
    $region39: #{down_block.5} parent=5 // pred_region
      %s229 = ssub.s32 %s9, 2
      // Predicated region
      $region41: #{down_block.5} parent=39 // pred_check
        %p230 = pneg %p106
      $region42: #{down_block.5} parent=39 // pred_check_branch
        %232 = sbr.rel (%p230) target = $region44
      $region43: #{down_block.5} parent=39 // pred_region
        %p233 = scmp.lt.s32.totalorder %s15, 1
        %s234 = scalar_select %p233, %s15, 1
        %s235 = smul.addr %s234, 2
        %s236 = smul.addr %s235, 4
        %s237 = scalar_lea.vmem %s3, %s236
      $region44: #{down_block.5} parent=39 // pred_fallthru
        _
    $region40: #{down_block.5} parent=5 // pred_fallthru
      _
  $region6: #{down_block.5} parent=0 // loop_footer
    %s13 = sadd.s32 1, %s9
  $region7: #{down_block.5} parent=0 // loop_footer_branch
    %8 = sbr.rel target = $region3
  $region8: #{down_block.5} parent=0 // loop_exit
    _

// kernel: down_block.4
$region0: #{down_block.4}
  #allocation0 [shape = 'u32[]', space=smem, size = 0x4, offset = 0x4, fixed_abs, tag = 'smem constant byte address 0x4 - core index']
  #allocation1 [shape = 'u32[144,128]{1,0:T(1,128)}', space=vmem, size = 0x12000, scoped, tag = 'internal scratch']
  %s0 = inlined_call_operand.vmem [shape: bf16[2,9,144], index: 0, kind: input, shape index: {}]
  %s1 = inlined_call_operand.vmem [shape: bf16[2,144,256], index: 1, kind: input, shape index: {}]
  %s2 = inlined_call_operand.vmem [shape: bf16[2,8,256], index: 2, kind: output, shape index: {0}]
  %s3 = inlined_call_operand.vmem [shape: f32[2,2,256], index: 3, kind: output, shape index: {1}]
  %4 = xla_tuple %s2, %s3
  %s5 = sld [smem:[#allocation0]]
  $region49: #{down_block.4} parent=0
    _
  %s7 = ssub.s32 1, %s5
  %s8 = scalar_select 0, %s7, %s5
  loop: start=0, step=1, limit=4
  $region2: #{down_block.4} parent=0 // loop_pre_header
    _
  $region3: #{down_block.4} parent=0 // loop_header
    %s10 = sphi 0, %s14
    %p11 = scmp.ge.s32.totalorder %s10, 4
    %s20 = sphi 0, %s22
    %s23 = sphi 0, %s20
    %s24 = sphi 0, %s23
    %s40 = sphi 0, %s24
    %s44 = sphi 0, %s44
    %s46 = sphi 0, %s44
    %s47 = sphi 0, %s46
    %s61 = sphi 0, %s47
    %s67 = sphi 0, %s69
    %s70 = sphi 0, %s67
    %s71 = sphi 0, %s70
    %s87 = sphi 0, %s71
    %s93 = sphi 0, %s95
    %s96 = sphi 0, %s93
    %s97 = sphi 0, %s96
    %s113 = sphi 0, %s97
  $region4: #{down_block.4} parent=0 // loop_header_branch
    %13 = sbr.rel (%p11) target = $region8
  $region5: #{down_block.4} parent=0 // loop_body
    %s15 = ssub.s32 %s10, 1
    %s16 = ssub.s32 %s10, 2
    %s17 = sadd.s32 %s10, 1
    %s18 = ssub.s32 %s10, %s17
    %p19 = scmp.eq.s32.totalorder %s18, 0
    %s21 = sadd.s32 %s20, 1
    %s22 = scalar_select %p19, %s20, %s21
    %p25 = pneg %p19
    %p26 = scmp.eq.s32.totalorder %s10, 1
    %p27 = por %p25, %p26
    %p28 = scmp.ne.s32.totalorder %s20, %s23
    %p29 = scmp.eq.s32.totalorder %s10, 0
    %p30 = por %p28, %p29
    %p31 = scmp.ne.s32.totalorder %s20, %s23
    %p32 = scmp.eq.s32.totalorder %s15, 1
    %p33 = por %p31, %p32
    %p34 = scmp.ne.s32.totalorder %s23, %s24
    %p35 = scmp.eq.s32.totalorder %s15, 0
    %p36 = por %p34, %p35
    %p37 = scmp.ne.s32.totalorder %s23, %s24
    %p38 = scmp.eq.s32.totalorder %s16, 1
    %p39 = por %p37, %p38
    %p41 = scmp.ne.s32.totalorder %s24, %s40
    %p42 = scmp.eq.s32.totalorder %s16, 0
    %p43 = por %p41, %p42
    %s45 = sadd.s32 %s44, 1
    %p48 = scmp.eq.s32.totalorder %s10, 1
    %p49 = scmp.ne.s32.totalorder %s44, %s46
    %p50 = scmp.eq.s32.totalorder %s10, 0
    %p51 = por %p49, %p50
    %p52 = scmp.ne.s32.totalorder %s44, %s46
    %p53 = scmp.eq.s32.totalorder %s15, 1
    %p54 = por %p52, %p53
    %p55 = scmp.ne.s32.totalorder %s46, %s47
    %p56 = scmp.eq.s32.totalorder %s15, 0
    %p57 = por %p55, %p56
    %p58 = scmp.ne.s32.totalorder %s46, %s47
    %p59 = scmp.eq.s32.totalorder %s16, 1
    %p60 = por %p58, %p59
    %p62 = scmp.ne.s32.totalorder %s47, %s61
    %p63 = scmp.eq.s32.totalorder %s16, 0
    %p64 = por %p62, %p63
    %s65 = ssub.s32 %s10, %s17
    %p66 = scmp.eq.s32.totalorder %s65, 0
    %s68 = sadd.s32 %s67, 1
    %s69 = scalar_select %p66, %s67, %s68
    %p72 = pneg %p66
    %p73 = scmp.eq.s32.totalorder %s10, 1
    %p74 = por %p72, %p73
    %p75 = scmp.ne.s32.totalorder %s67, %s70
    %p76 = scmp.eq.s32.totalorder %s10, 0
    %p77 = por %p75, %p76
    %p78 = scmp.ne.s32.totalorder %s67, %s70
    %p79 = scmp.eq.s32.totalorder %s15, 1
    %p80 = por %p78, %p79
    %p81 = scmp.ne.s32.totalorder %s70, %s71
    %p82 = scmp.eq.s32.totalorder %s15, 0
    %p83 = por %p81, %p82
    %p84 = scmp.ne.s32.totalorder %s70, %s71
    %p85 = scmp.eq.s32.totalorder %s16, 1
    %p86 = por %p84, %p85
    %p88 = scmp.ne.s32.totalorder %s71, %s87
    %p89 = scmp.eq.s32.totalorder %s16, 0
    %p90 = por %p88, %p89
    %s91 = ssub.s32 %s10, %s17
    %p92 = scmp.eq.s32.totalorder %s91, 0
    %s94 = sadd.s32 %s93, 1
    %s95 = scalar_select %p92, %s93, %s94
    %p98 = pneg %p92
    %p99 = scmp.eq.s32.totalorder %s10, 1
    %p100 = por %p98, %p99
    %p101 = scmp.ne.s32.totalorder %s93, %s96
    %p102 = scmp.eq.s32.totalorder %s10, 0
    %p103 = por %p101, %p102
    %p104 = scmp.ne.s32.totalorder %s93, %s96
    %p105 = scmp.eq.s32.totalorder %s15, 1
    %p106 = por %p104, %p105
    %p107 = scmp.ne.s32.totalorder %s96, %s97
    %p108 = scmp.eq.s32.totalorder %s15, 0
    %p109 = por %p107, %p108
    %p110 = scmp.ne.s32.totalorder %s96, %s97
    %p111 = scmp.eq.s32.totalorder %s16, 1
    %p112 = por %p110, %p111
    %p114 = scmp.ne.s32.totalorder %s97, %s113
    %p115 = scmp.eq.s32.totalorder %s16, 0
    %p116 = por %p114, %p115
    %p117 = scmp.le.s32.totalorder 1, %s10
    %p118 = scmp.lt.s32.totalorder %s10, 3
    %p119 = pnand %p117, %p118
    %p120 = pneg %p119
    // Predicated region
    $region9: #{down_block.4} parent=5 // pred_check
      _
    $region10: #{down_block.4} parent=5 // pred_check_branch
      %122 = sbr.rel (%p119) target = $region12
    $region11: #{down_block.4} parent=5 // pred_region
      %s123 = ssub.s32 %s10, 1
      // Predicated region
      $region13: #{down_block.4} parent=11 // pred_check
        %p124 = pneg %p57
      $region14: #{down_block.4} parent=11 // pred_check_branch
        %126 = sbr.rel (%p124) target = $region16
      $region15: #{down_block.4} parent=11 // pred_region
        _
      $region16: #{down_block.4} parent=11 // pred_fallthru
        _
    $region12: #{down_block.4} parent=5 // pred_fallthru
      _
    %p127 = scmp.lt.s32.totalorder %s10, 2
    // Predicated region
    $region17: #{down_block.4} parent=5 // pred_check
      %p128 = pneg %p127
    $region18: #{down_block.4} parent=5 // pred_check_branch
      %130 = sbr.rel (%p128) target = $region20
    $region19: #{down_block.4} parent=5 // pred_region
      // Predicated region
      $region21: #{down_block.4} parent=19 // pred_check
        %p131 = pneg %p30
      $region22: #{down_block.4} parent=19 // pred_check_branch
        %133 = sbr.rel (%p131) target = $region24
      $region23: #{down_block.4} parent=19 // pred_region
        %p134 = scmp.lt.s32.totalorder %s10, 1
        %s135 = scalar_select %p134, %s10, 1
        %s136 = smul.addr %s135, 4
        %s137 = smul.addr %s136, 4
        %s138 = scalar_lea.vmem %s0, %s137
      $region24: #{down_block.4} parent=19 // pred_fallthru
        _
    $region20: #{down_block.4} parent=5 // pred_fallthru
      _
    %p139 = scmp.le.s32.totalorder 1, %s10
    %p140 = scmp.lt.s32.totalorder %s10, 3
    %p141 = pnand %p139, %p140
    %p142 = pneg %p141
    // Predicated region
    $region25: #{down_block.4} parent=5 // pred_check
      _
    $region26: #{down_block.4} parent=5 // pred_check_branch
      %144 = sbr.rel (%p141) target = $region28
    $region27: #{down_block.4} parent=5 // pred_region
      %s145 = ssub.s32 %s10, 1
      %p146 = scmp.lt.s32.totalorder %s15, 1
      %s147 = scalar_select %p146, %s15, 1
      %s148 = smul.addr %s147, 4
      %s149 = smul.addr %s148, 4
      %s150 = scalar_lea.vmem %s0, %s149
      %p151 = pneg %p36
      %p152 = pneg %p33
      %p153 = pneg %p57
      %p154 = pneg %p54
      %p155 = pneg %p83
      %p156 = pneg %p80
      %p157 = scmp.lt.s32.totalorder %s15, 1
      %s158 = scalar_select %p157, %s15, 1
      %s159 = smul.addr %s158, 2
      %s160 = smul.addr %s159, 4
      %s161 = scalar_lea.vmem %s2, %s160
      %p162 = pneg %p109
      %p163 = pneg %p106
      %p164 = scmp.lt.s32.totalorder %s15, 1
      %s165 = scalar_select %p164, %s15, 1
      %s166 = smul.addr %s165, 2
      %s167 = smul.addr %s166, 2
      %s168 = scalar_lea.vmem %s3, %s167
      %p169 = scmp.lt.s32.totalorder %s15, 1
      %s170 = scalar_select %p169, %s15, 1
      %s171 = smul.addr %s170, 4
      %s172 = smul.addr %s171, 4
      %s173 = scalar_lea.vmem %s0, %s172
      %p174 = scmp.lt.s32.totalorder %s15, 1
      %s175 = scalar_select %p174, %s15, 1
      %s176 = smul.addr %s175, 2
      %s177 = smul.addr %s176, 4
      %s178 = scalar_lea.vmem %s2, %s177
      %p179 = scmp.lt.s32.totalorder %s15, 1
      %s180 = scalar_select %p179, %s15, 1
      %s181 = smul.addr %s180, 2
      %s182 = smul.addr %s181, 2
      %s183 = scalar_lea.vmem %s3, %s182
      %v185 = vld [vmem:[%s173] sm:$0xff]
      %v186 = vld [vmem:[%s1] sm:$0xff]
      %v187 = vld [vmem:[%s1 + $0x8] sm:$0xff]
      %v188 = vld [vmem:[%s1 + $0x10] sm:$0xff]
      %v189 = vld [vmem:[%s1 + $0x18] sm:$0xff]
      %v190 = vld [vmem:[%s1 + $0x20] sm:$0xff]
      %v191 = vld [vmem:[%s1 + $0x28] sm:$0xff]
      %v192 = vld [vmem:[%s1 + $0x30] sm:$0xff]
      %v193 = vld [vmem:[%s1 + $0x38] sm:$0xff]
      %v194 = vld [vmem:[%s1 + $0x40] sm:$0xff]
      %v195 = vld [vmem:[%s1 + $0x48] sm:$0xff]
      %v196 = vld [vmem:[%s1 + $0x50] sm:$0xff]
      %v197 = vld [vmem:[%s1 + $0x58] sm:$0xff]
      %v198 = vld [vmem:[%s1 + $0x60] sm:$0xff]
      %v199 = vld [vmem:[%s1 + $0x68] sm:$0xff]
      %v200 = vld [vmem:[%s1 + $0x70] sm:$0xff]
      %v201 = vld [vmem:[%s1 + $0x78] sm:$0xff]
      %v202 = vld [vmem:[%s1 + $0x80] sm:$0xff]
      %v203 = vld [vmem:[%s1 + $0x88] sm:$0xff]
      %v204 = vld [vmem:[%s173 + $0x8] sm:$0x11]
      %s205 = scalar_lea.vmem %s1, 144
      %v206 = vld [vmem:[%s205] sm:$0xff]
      %v207 = vld [vmem:[%s205 + $0x8] sm:$0xff]
      %v208 = vld [vmem:[%s205 + $0x10] sm:$0xff]
      %v209 = vld [vmem:[%s205 + $0x18] sm:$0xff]
      %v210 = vld [vmem:[%s205 + $0x20] sm:$0xff]
      %v211 = vld [vmem:[%s205 + $0x28] sm:$0xff]
      %v212 = vld [vmem:[%s205 + $0x30] sm:$0xff]
      %v213 = vld [vmem:[%s205 + $0x38] sm:$0xff]
      %v214 = vld [vmem:[%s205 + $0x40] sm:$0xff]
      %v215 = vld [vmem:[%s205 + $0x48] sm:$0xff]
      %v216 = vld [vmem:[%s205 + $0x50] sm:$0xff]
      %v217 = vld [vmem:[%s205 + $0x58] sm:$0xff]
      %v218 = vld [vmem:[%s205 + $0x60] sm:$0xff]
      %v219 = vld [vmem:[%s205 + $0x68] sm:$0xff]
      %v220 = vld [vmem:[%s205 + $0x70] sm:$0xff]
      %v221 = vld [vmem:[%s205 + $0x78] sm:$0xff]
      %v222 = vld [vmem:[%s205 + $0x80] sm:$0xff]
      %v223 = vld [vmem:[%s205 + $0x88] sm:$0xff]
      %v226 = vunpack.c.l.b16 %v185
      %v227 = vunpack.c.h.b16 %v185
      %v228 = vunpack.c.l.b16 %v204
      %v229 = vunpack.c.h.b16 %v204
      %v230 = vpack.c.b16 %v228, %v226
      %v231 = vpack.c.b16 %v229, %v227
      %v233 = vshrl.u32 %v230, 16
      %v235 = vshll.u32 %v230, 16
      %v237 = vrot.slane %v235, 1
      %v238 = vor.u32 %v233, %v237
      %v240 = vshrl.u32 %v231, 16
      %v242 = vshll.u32 %v231, 16
      %v244 = vrot.slane %v242, 1
      %v245 = vor.u32 %v240, %v244
      %v265 = vunpack.c.l.b16 %v206
      %v266 = vunpack.c.h.b16 %v206
      %v267 = vunpack.c.l.b16 %v207
      %v268 = vunpack.c.h.b16 %v207
      %v269 = vunpack.c.l.b16 %v208
      %v270 = vunpack.c.h.b16 %v208
      %v271 = vunpack.c.l.b16 %v209
      %v272 = vunpack.c.h.b16 %v209
      %v273 = vunpack.c.l.b16 %v210
      %v274 = vunpack.c.h.b16 %v210
      %v275 = vunpack.c.l.b16 %v211
      %v276 = vunpack.c.h.b16 %v211
      %v277 = vunpack.c.l.b16 %v212
      %v278 = vunpack.c.h.b16 %v212
      %v279 = vunpack.c.l.b16 %v213
      %v280 = vunpack.c.h.b16 %v213
      %v281 = vunpack.c.l.b16 %v214
      %v282 = vunpack.c.h.b16 %v214
      %v283 = vunpack.c.l.b16 %v215
      %v284 = vunpack.c.h.b16 %v215
      %v285 = vunpack.c.l.b16 %v216
      %v286 = vunpack.c.h.b16 %v216
      %v287 = vunpack.c.l.b16 %v217
      %v288 = vunpack.c.h.b16 %v217
      %v289 = vunpack.c.l.b16 %v218
      %v290 = vunpack.c.h.b16 %v218
      %v291 = vunpack.c.l.b16 %v219
      %v292 = vunpack.c.h.b16 %v219
      %v293 = vunpack.c.l.b16 %v220
      %v294 = vunpack.c.h.b16 %v220
      %v295 = vunpack.c.l.b16 %v221
      %v296 = vunpack.c.h.b16 %v221
      %v297 = vunpack.c.l.b16 %v222
      %v298 = vunpack.c.h.b16 %v222
      %v299 = vunpack.c.l.b16 %v223
      %v300 = vunpack.c.h.b16 %v223
      %v301 = vpack.c.b16 %v267, %v265
      %v302 = vpack.c.b16 %v268, %v266
      %v303 = vpack.c.b16 %v271, %v269
      %v304 = vpack.c.b16 %v272, %v270
      %v305 = vpack.c.b16 %v275, %v273
      %v306 = vpack.c.b16 %v276, %v274
      %v307 = vpack.c.b16 %v279, %v277
      %v308 = vpack.c.b16 %v280, %v278
      %v309 = vpack.c.b16 %v283, %v281
      %v310 = vpack.c.b16 %v284, %v282
      %v311 = vpack.c.b16 %v287, %v285
      %v312 = vpack.c.b16 %v288, %v286
      %v313 = vpack.c.b16 %v291, %v289
      %v314 = vpack.c.b16 %v292, %v290
      %v315 = vpack.c.b16 %v295, %v293
      %v316 = vpack.c.b16 %v296, %v294
      %v317 = vpack.c.b16 %v299, %v297
      %v318 = vpack.c.b16 %v300, %v298
      %vm337 = vcmask 130048
      %v339 = vsel %vm337, %v245, 0
      %341 = vmatprep.subr.bf16.mxu0 %v302
      %342 = vmatpush1.bf16.msra.mxu0 %v301
      %343 = vmatprep.subr.bf16.mxu0 %v304
      %344 = vmatpush1.bf16.msra.mxu0 %v303
      %345 = vmatprep.subr.bf16.mxu0 %v306
      %346 = vmatpush1.bf16.msra.mxu0 %v305
      %347 = vmatprep.subr.bf16.mxu0 %v308
      %348 = vmatpush1.bf16.msra.mxu0 %v307
      %349 = vmatprep.subr.bf16.mxu0 %v310
      %350 = vmatpush1.bf16.msra.mxu0 %v309
      %351 = vmatprep.subr.bf16.mxu0 %v312
      %352 = vmatpush1.bf16.msra.mxu0 %v311
      %353 = vmatprep.subr.bf16.mxu0 %v314
      %354 = vmatpush1.bf16.msra.mxu0 %v313
      %355 = vmatprep.subr.bf16.mxu0 %v316
      %356 = vmatpush1.bf16.msra.mxu0 %v315
      %357 = vmatprep.subr.bf16.mxu0 %v318
      %358 = vmatpush1.bf16.msra.mxu0 %v317
      %359 = vmatprep.subr.bf16.mxu0 0
      %360 = vmatpush1.bf16.msra.mxu0 0
      %361 = vmatprep.subr.bf16.mxu0 0
      %362 = vmatpush1.bf16.msra.mxu0 0
      %363 = vmatprep.subr.bf16.mxu0 0
      %364 = vmatpush1.bf16.msra.mxu0 0
      %365 = vmatprep.subr.bf16.mxu0 0
      %366 = vmatpush1.bf16.msra.mxu0 0
      %367 = vmatprep.subr.bf16.mxu0 0
      %368 = vmatpush1.bf16.msra.mxu0 0
      %369 = vmatprep.subr.bf16.mxu0 0
      %370 = vmatpush1.bf16.msra.mxu0 0
      %371 = vmatprep.subr.bf16.mxu0 0
      %372 = vmatpush1.bf16.msra.mxu0 0
      %373 = vmatprep.mubr.bf16.mxu0 %v339
      %374 = vmatmul.mubr.bf16.gmra.mrb[0].mxu0 %v238
      %v375 = vpop.f32.mrb[0].mxu0
      %v376 = vadd.f32 0.0, %v375
      %v377 = vpop.f32.mrb[0].mxu0
      %v378 = vadd.f32 0.0, %v377
      %v379 = vpop.f32.mrb[0].mxu0
      %v380 = vpop.f32.mrb[0].mxu0
      %381 = vdwg.mxu0
      %v382 = vpack.c.b16 %v226, %v226
      %v383 = vpack.c.b16 %v227, %v227
      %v403 = vunpack.c.l.b16 %v186
      %v404 = vunpack.c.h.b16 %v186
      %v405 = vunpack.c.l.b16 %v187
      %v406 = vunpack.c.h.b16 %v187
      %v407 = vunpack.c.l.b16 %v188
      %v408 = vunpack.c.h.b16 %v188
      %v409 = vunpack.c.l.b16 %v189
      %v410 = vunpack.c.h.b16 %v189
      %v411 = vunpack.c.l.b16 %v190
      %v412 = vunpack.c.h.b16 %v190
      %v413 = vunpack.c.l.b16 %v191
      %v414 = vunpack.c.h.b16 %v191
      %v415 = vunpack.c.l.b16 %v192
      %v416 = vunpack.c.h.b16 %v192
      %v417 = vunpack.c.l.b16 %v193
      %v418 = vunpack.c.h.b16 %v193
      %v419 = vunpack.c.l.b16 %v194
      %v420 = vunpack.c.h.b16 %v194
      %v421 = vunpack.c.l.b16 %v195
      %v422 = vunpack.c.h.b16 %v195
      %v423 = vunpack.c.l.b16 %v196
      %v424 = vunpack.c.h.b16 %v196
      %v425 = vunpack.c.l.b16 %v197
      %v426 = vunpack.c.h.b16 %v197
      %v427 = vunpack.c.l.b16 %v198
      %v428 = vunpack.c.h.b16 %v198
      %v429 = vunpack.c.l.b16 %v199
      %v430 = vunpack.c.h.b16 %v199
      %v431 = vunpack.c.l.b16 %v200
      %v432 = vunpack.c.h.b16 %v200
      %v433 = vunpack.c.l.b16 %v201
      %v434 = vunpack.c.h.b16 %v201
      %v435 = vunpack.c.l.b16 %v202
      %v436 = vunpack.c.h.b16 %v202
      %v437 = vunpack.c.l.b16 %v203
      %v438 = vunpack.c.h.b16 %v203
      %v439 = vpack.c.b16 %v405, %v403
      %v440 = vpack.c.b16 %v406, %v404
      %v441 = vpack.c.b16 %v409, %v407
      %v442 = vpack.c.b16 %v410, %v408
      %v443 = vpack.c.b16 %v413, %v411
      %v444 = vpack.c.b16 %v414, %v412
      %v445 = vpack.c.b16 %v417, %v415
      %v446 = vpack.c.b16 %v418, %v416
      %v447 = vpack.c.b16 %v421, %v419
      %v448 = vpack.c.b16 %v422, %v420
      %v449 = vpack.c.b16 %v425, %v423
      %v450 = vpack.c.b16 %v426, %v424
      %v451 = vpack.c.b16 %v429, %v427
      %v452 = vpack.c.b16 %v430, %v428
      %v453 = vpack.c.b16 %v433, %v431
      %v454 = vpack.c.b16 %v434, %v432
      %v455 = vpack.c.b16 %v437, %v435
      %v456 = vpack.c.b16 %v438, %v436
      %v476 = vsel %vm337, %v383, 0
      %478 = vmatprep.subr.bf16.mxu0 %v440
      %479 = vmatpush1.bf16.msra.mxu0 %v439
      %480 = vmatprep.subr.bf16.mxu0 %v442
      %481 = vmatpush1.bf16.msra.mxu0 %v441
      %482 = vmatprep.subr.bf16.mxu0 %v444
      %483 = vmatpush1.bf16.msra.mxu0 %v443
      %484 = vmatprep.subr.bf16.mxu0 %v446
      %485 = vmatpush1.bf16.msra.mxu0 %v445
      %486 = vmatprep.subr.bf16.mxu0 %v448
      %487 = vmatpush1.bf16.msra.mxu0 %v447
      %488 = vmatprep.subr.bf16.mxu0 %v450
      %489 = vmatpush1.bf16.msra.mxu0 %v449
      %490 = vmatprep.subr.bf16.mxu0 %v452
      %491 = vmatpush1.bf16.msra.mxu0 %v451
      %492 = vmatprep.subr.bf16.mxu0 %v454
      %493 = vmatpush1.bf16.msra.mxu0 %v453
      %494 = vmatprep.subr.bf16.mxu0 %v456
      %495 = vmatpush1.bf16.msra.mxu0 %v455
      %496 = vmatprep.subr.bf16.mxu0 0
      %497 = vmatpush1.bf16.msra.mxu0 0
      %498 = vmatprep.subr.bf16.mxu0 0
      %499 = vmatpush1.bf16.msra.mxu0 0
      %500 = vmatprep.subr.bf16.mxu0 0
      %501 = vmatpush1.bf16.msra.mxu0 0
      %502 = vmatprep.subr.bf16.mxu0 0
      %503 = vmatpush1.bf16.msra.mxu0 0
      %504 = vmatprep.subr.bf16.mxu0 0
      %505 = vmatpush1.bf16.msra.mxu0 0
      %506 = vmatprep.subr.bf16.mxu0 0
      %507 = vmatpush1.bf16.msra.mxu0 0
      %508 = vmatprep.subr.bf16.mxu0 0
      %509 = vmatpush1.bf16.msra.mxu0 0
      %510 = vmatprep.mubr.bf16.mxu0 %v476
      %511 = vmatmul.mubr.bf16.gmra.mrb[0].mxu0 %v382
      %v512 = vpop.f32.mrb[0].mxu0
      %v513 = vadd.f32 %v376, %v512
      %v514 = vpop.f32.mrb[0].mxu0
      %v515 = vadd.f32 %v378, %v514
      %v516 = vpop.f32.mrb[0].mxu0
      %v517 = vpop.f32.mrb[0].mxu0
      %518 = vdwg.mxu0
      %v519 = vpack.c.bf16 %v513, %v513
      %v520 = vpack.c.bf16 %v515, %v515
      %v523 = vunpack.c.l.b16 %v519
      %v524 = vunpack.c.l.b16 %v520
      %v525 = vpack.c.b16 %v524, %v523
      %527 = vst [vmem:[%s178] sm:$0xff] %v525
      %v528 = vrot.slane %v513, 4
      %v529 = vadd.f32 %v513, %v528
      %v530 = vrot.slane %v529, 2
      %v531 = vadd.f32 %v529, %v530
      %v532 = vrot.slane %v531, 1
      %v533 = vadd.f32 %v531, %v532
      %v534 = vrot.slane %v515, 4
      %v535 = vadd.f32 %v515, %v534
      %v536 = vrot.slane %v535, 2
      %v537 = vadd.f32 %v535, %v536
      %v538 = vrot.slane %v537, 1
      %v539 = vadd.f32 %v537, %v538
      %v540 = vadd.f32 %v533, 0.0
      %v541 = vadd.f32 %v539, 0.0
      %v542 = vmul.f32 %v513, %v513
      %v543 = vmul.f32 %v515, %v515
      %v544 = vrot.slane %v542, 4
      %v545 = vadd.f32 %v542, %v544
      %v546 = vrot.slane %v545, 2
      %v547 = vadd.f32 %v545, %v546
      %v548 = vrot.slane %v547, 1
      %v549 = vadd.f32 %v547, %v548
      %v550 = vrot.slane %v543, 4
      %v551 = vadd.f32 %v543, %v550
      %v552 = vrot.slane %v551, 2
      %v553 = vadd.f32 %v551, %v552
      %v554 = vrot.slane %v553, 1
      %v555 = vadd.f32 %v553, %v554
      %v556 = vadd.f32 %v549, 0.0
      %v557 = vadd.f32 %v555, 0.0
      %v560 = vcombine.low %v540, %v541
      %v562 = vunpack.c.l.s4 1966171168
      %v563 = vunpack.c.0.s8 %v562
      %v564 = vlaneseq
      %v565 = vshrl.u32 %v564, 7
      %v566 = vsub.s32 %v563, %v565
      %v567 = vrot.slane %v560, %v566
      %v569 = vunpack.c.l.s4 1966171168
      %v570 = vunpack.c.0.s8 %v569
      %v571 = vlaneseq
      %v572 = vshrl.u32 %v571, 7
      %v573 = vsub.s32 %v570, %v572
      %v574 = vrot.slane %v567, %v573
      %v576 = vlaneseq
      %vm577 = vcmp.ge.s32.totalorder %v576, 0
      %vm578 = vcmp.lt.s32.totalorder %v576, 256
      %vm579 = vmand %vm577, %vm578
      %580 = vst.msk [vmem:[%s183] ss:$2 sm:$0x3] %vm579, %v574
      %v583 = vcombine.low %v556, %v557
      %v585 = vunpack.c.l.s4 1966171168
      %v586 = vunpack.c.0.s8 %v585
      %v587 = vlaneseq
      %v588 = vshrl.u32 %v587, 7
      %v589 = vsub.s32 %v586, %v588
      %v590 = vrot.slane %v583, %v589
      %v592 = vunpack.c.l.s4 1966171168
      %v593 = vunpack.c.0.s8 %v592
      %v594 = vlaneseq
      %v595 = vshrl.u32 %v594, 7
      %v596 = vsub.s32 %v593, %v595
      %v597 = vrot.slane %v590, %v596
      %s599 = scalar_lea.vmem %s183, 1
      %600 = vst.msk [vmem:[%s599] ss:$2 sm:$0x3] %vm579, %v597
      %p601 = scmp.lt.s32.totalorder %s15, 1
      %s602 = scalar_select %p601, %s15, 1
      %s603 = smul.addr %s602, 2
      %s604 = smul.addr %s603, 4
      %s605 = scalar_lea.vmem %s2, %s604
      %p606 = scmp.lt.s32.totalorder %s15, 1
      %s607 = scalar_select %p606, %s15, 1
      %s608 = smul.addr %s607, 2
      %s609 = smul.addr %s608, 2
      %s610 = scalar_lea.vmem %s3, %s609
      // Predicated region
      $region29: #{down_block.4} parent=27 // pred_check
        %p611 = pneg %p80
      $region30: #{down_block.4} parent=27 // pred_check_branch
        %613 = sbr.rel (%p611) target = $region32
      $region31: #{down_block.4} parent=27 // pred_region
        _
      $region32: #{down_block.4} parent=27 // pred_fallthru
        _
      // Predicated region
      $region33: #{down_block.4} parent=27 // pred_check
        %p614 = pneg %p106
      $region34: #{down_block.4} parent=27 // pred_check_branch
        %616 = sbr.rel (%p614) target = $region36
      $region35: #{down_block.4} parent=27 // pred_region
        _
      $region36: #{down_block.4} parent=27 // pred_fallthru
        _
    $region28: #{down_block.4} parent=5 // pred_fallthru
      _
    %p617 = scmp.le.s32.totalorder 2, %s10
    // Predicated region
    $region37: #{down_block.4} parent=5 // pred_check
      %p618 = pneg %p617
    $region38: #{down_block.4} parent=5 // pred_check_branch
      %620 = sbr.rel (%p618) target = $region40
    $region39: #{down_block.4} parent=5 // pred_region
      %s621 = ssub.s32 %s10, 2
      // Predicated region
      $region41: #{down_block.4} parent=39 // pred_check
        %p622 = pneg %p86
      $region42: #{down_block.4} parent=39 // pred_check_branch
        %624 = sbr.rel (%p622) target = $region44
      $region43: #{down_block.4} parent=39 // pred_region
        %p625 = scmp.lt.s32.totalorder %s16, 1
        %s626 = scalar_select %p625, %s16, 1
        %s627 = smul.addr %s626, 2
        %s628 = smul.addr %s627, 4
        %s629 = scalar_lea.vmem %s2, %s628
      $region44: #{down_block.4} parent=39 // pred_fallthru
        _
      // Predicated region
      $region45: #{down_block.4} parent=39 // pred_check
        %p630 = pneg %p112
      $region46: #{down_block.4} parent=39 // pred_check_branch
        %632 = sbr.rel (%p630) target = $region48
      $region47: #{down_block.4} parent=39 // pred_region
        %p633 = scmp.lt.s32.totalorder %s16, 1
        %s634 = scalar_select %p633, %s16, 1
        %s635 = smul.addr %s634, 2
        %s636 = smul.addr %s635, 2
        %s637 = scalar_lea.vmem %s3, %s636
      $region48: #{down_block.4} parent=39 // pred_fallthru
        _
    $region40: #{down_block.4} parent=5 // pred_fallthru
      _
  $region6: #{down_block.4} parent=0 // loop_footer
    %s14 = sadd.s32 1, %s10
  $region7: #{down_block.4} parent=0 // loop_footer_branch
    %9 = sbr.rel target = $region3
  $region8: #{down_block.4} parent=0 // loop_exit
    _

// kernel: down_block.6
$region0: #{down_block.6}
  #allocation0 [shape = 'u32[]', space=smem, size = 0x4, offset = 0x4, fixed_abs, tag = 'smem constant byte address 0x4 - core index']
  #allocation1 [shape = 'u32[144,128]{1,0:T(1,128)}', space=vmem, size = 0x12000, scoped, tag = 'internal scratch']
  %s0 = inlined_call_operand.vmem [shape: bf16[2,10,320], index: 0, kind: input, shape index: {}]
  %s1 = inlined_call_operand.vmem [shape: bf16[3,320,256], index: 1, kind: input, shape index: {}]
  %s2 = inlined_call_operand.vmem [shape: bf16[2,8,256], index: 2, kind: output, shape index: {0}]
  %s3 = inlined_call_operand.vmem [shape: f32[2,2,256], index: 3, kind: output, shape index: {1}]
  %4 = xla_tuple %s2, %s3
  %s5 = sld [smem:[#allocation0]]
  $region49: #{down_block.6} parent=0
    _
  %s7 = ssub.s32 1, %s5
  %s8 = scalar_select 0, %s7, %s5
  loop: start=0, step=1, limit=4
  $region2: #{down_block.6} parent=0 // loop_pre_header
    _
  $region3: #{down_block.6} parent=0 // loop_header
    %s10 = sphi 0, %s14
    %p11 = scmp.ge.s32.totalorder %s10, 4
    %s20 = sphi 0, %s22
    %s23 = sphi 0, %s20
    %s24 = sphi 0, %s23
    %s40 = sphi 0, %s24
    %s44 = sphi 0, %s44
    %s46 = sphi 0, %s44
    %s47 = sphi 0, %s46
    %s61 = sphi 0, %s47
    %s67 = sphi 0, %s69
    %s70 = sphi 0, %s67
    %s71 = sphi 0, %s70
    %s87 = sphi 0, %s71
    %s93 = sphi 0, %s95
    %s96 = sphi 0, %s93
    %s97 = sphi 0, %s96
    %s113 = sphi 0, %s97
  $region4: #{down_block.6} parent=0 // loop_header_branch
    %13 = sbr.rel (%p11) target = $region8
  $region5: #{down_block.6} parent=0 // loop_body
    %s15 = ssub.s32 %s10, 1
    %s16 = ssub.s32 %s10, 2
    %s17 = sadd.s32 %s10, 1
    %s18 = ssub.s32 %s10, %s17
    %p19 = scmp.eq.s32.totalorder %s18, 0
    %s21 = sadd.s32 %s20, 1
    %s22 = scalar_select %p19, %s20, %s21
    %p25 = pneg %p19
    %p26 = scmp.eq.s32.totalorder %s10, 1
    %p27 = por %p25, %p26
    %p28 = scmp.ne.s32.totalorder %s20, %s23
    %p29 = scmp.eq.s32.totalorder %s10, 0
    %p30 = por %p28, %p29
    %p31 = scmp.ne.s32.totalorder %s20, %s23
    %p32 = scmp.eq.s32.totalorder %s15, 1
    %p33 = por %p31, %p32
    %p34 = scmp.ne.s32.totalorder %s23, %s24
    %p35 = scmp.eq.s32.totalorder %s15, 0
    %p36 = por %p34, %p35
    %p37 = scmp.ne.s32.totalorder %s23, %s24
    %p38 = scmp.eq.s32.totalorder %s16, 1
    %p39 = por %p37, %p38
    %p41 = scmp.ne.s32.totalorder %s24, %s40
    %p42 = scmp.eq.s32.totalorder %s16, 0
    %p43 = por %p41, %p42
    %s45 = sadd.s32 %s44, 1
    %p48 = scmp.eq.s32.totalorder %s10, 1
    %p49 = scmp.ne.s32.totalorder %s44, %s46
    %p50 = scmp.eq.s32.totalorder %s10, 0
    %p51 = por %p49, %p50
    %p52 = scmp.ne.s32.totalorder %s44, %s46
    %p53 = scmp.eq.s32.totalorder %s15, 1
    %p54 = por %p52, %p53
    %p55 = scmp.ne.s32.totalorder %s46, %s47
    %p56 = scmp.eq.s32.totalorder %s15, 0
    %p57 = por %p55, %p56
    %p58 = scmp.ne.s32.totalorder %s46, %s47
    %p59 = scmp.eq.s32.totalorder %s16, 1
    %p60 = por %p58, %p59
    %p62 = scmp.ne.s32.totalorder %s47, %s61
    %p63 = scmp.eq.s32.totalorder %s16, 0
    %p64 = por %p62, %p63
    %s65 = ssub.s32 %s10, %s17
    %p66 = scmp.eq.s32.totalorder %s65, 0
    %s68 = sadd.s32 %s67, 1
    %s69 = scalar_select %p66, %s67, %s68
    %p72 = pneg %p66
    %p73 = scmp.eq.s32.totalorder %s10, 1
    %p74 = por %p72, %p73
    %p75 = scmp.ne.s32.totalorder %s67, %s70
    %p76 = scmp.eq.s32.totalorder %s10, 0
    %p77 = por %p75, %p76
    %p78 = scmp.ne.s32.totalorder %s67, %s70
    %p79 = scmp.eq.s32.totalorder %s15, 1
    %p80 = por %p78, %p79
    %p81 = scmp.ne.s32.totalorder %s70, %s71
    %p82 = scmp.eq.s32.totalorder %s15, 0
    %p83 = por %p81, %p82
    %p84 = scmp.ne.s32.totalorder %s70, %s71
    %p85 = scmp.eq.s32.totalorder %s16, 1
    %p86 = por %p84, %p85
    %p88 = scmp.ne.s32.totalorder %s71, %s87
    %p89 = scmp.eq.s32.totalorder %s16, 0
    %p90 = por %p88, %p89
    %s91 = ssub.s32 %s10, %s17
    %p92 = scmp.eq.s32.totalorder %s91, 0
    %s94 = sadd.s32 %s93, 1
    %s95 = scalar_select %p92, %s93, %s94
    %p98 = pneg %p92
    %p99 = scmp.eq.s32.totalorder %s10, 1
    %p100 = por %p98, %p99
    %p101 = scmp.ne.s32.totalorder %s93, %s96
    %p102 = scmp.eq.s32.totalorder %s10, 0
    %p103 = por %p101, %p102
    %p104 = scmp.ne.s32.totalorder %s93, %s96
    %p105 = scmp.eq.s32.totalorder %s15, 1
    %p106 = por %p104, %p105
    %p107 = scmp.ne.s32.totalorder %s96, %s97
    %p108 = scmp.eq.s32.totalorder %s15, 0
    %p109 = por %p107, %p108
    %p110 = scmp.ne.s32.totalorder %s96, %s97
    %p111 = scmp.eq.s32.totalorder %s16, 1
    %p112 = por %p110, %p111
    %p114 = scmp.ne.s32.totalorder %s97, %s113
    %p115 = scmp.eq.s32.totalorder %s16, 0
    %p116 = por %p114, %p115
    %p117 = scmp.le.s32.totalorder 1, %s10
    %p118 = scmp.lt.s32.totalorder %s10, 3
    %p119 = pnand %p117, %p118
    %p120 = pneg %p119
    // Predicated region
    $region9: #{down_block.6} parent=5 // pred_check
      _
    $region10: #{down_block.6} parent=5 // pred_check_branch
      %122 = sbr.rel (%p119) target = $region12
    $region11: #{down_block.6} parent=5 // pred_region
      %s123 = ssub.s32 %s10, 1
      // Predicated region
      $region13: #{down_block.6} parent=11 // pred_check
        %p124 = pneg %p57
      $region14: #{down_block.6} parent=11 // pred_check_branch
        %126 = sbr.rel (%p124) target = $region16
      $region15: #{down_block.6} parent=11 // pred_region
        _
      $region16: #{down_block.6} parent=11 // pred_fallthru
        _
    $region12: #{down_block.6} parent=5 // pred_fallthru
      _
    %p127 = scmp.lt.s32.totalorder %s10, 2
    // Predicated region
    $region17: #{down_block.6} parent=5 // pred_check
      %p128 = pneg %p127
    $region18: #{down_block.6} parent=5 // pred_check_branch
      %130 = sbr.rel (%p128) target = $region20
    $region19: #{down_block.6} parent=5 // pred_region
      // Predicated region
      $region21: #{down_block.6} parent=19 // pred_check
        %p131 = pneg %p30
      $region22: #{down_block.6} parent=19 // pred_check_branch
        %133 = sbr.rel (%p131) target = $region24
      $region23: #{down_block.6} parent=19 // pred_region
        %p134 = scmp.lt.s32.totalorder %s10, 1
        %s135 = scalar_select %p134, %s10, 1
        %s136 = smul.addr %s135, 6
        %s137 = smul.addr %s136, 4
        %s138 = scalar_lea.vmem %s0, %s137
      $region24: #{down_block.6} parent=19 // pred_fallthru
        _
    $region20: #{down_block.6} parent=5 // pred_fallthru
      _
    %p139 = scmp.le.s32.totalorder 1, %s10
    %p140 = scmp.lt.s32.totalorder %s10, 3
    %p141 = pnand %p139, %p140
    %p142 = pneg %p141
    // Predicated region
    $region25: #{down_block.6} parent=5 // pred_check
      _
    $region26: #{down_block.6} parent=5 // pred_check_branch
      %144 = sbr.rel (%p141) target = $region28
    $region27: #{down_block.6} parent=5 // pred_region
      %s145 = ssub.s32 %s10, 1
      %p146 = scmp.lt.s32.totalorder %s15, 1
      %s147 = scalar_select %p146, %s15, 1
      %s148 = smul.addr %s147, 6
      %s149 = smul.addr %s148, 4
      %s150 = scalar_lea.vmem %s0, %s149
      %p151 = pneg %p36
      %p152 = pneg %p33
      %p153 = pneg %p57
      %p154 = pneg %p54
      %p155 = pneg %p83
      %p156 = pneg %p80
      %p157 = scmp.lt.s32.totalorder %s15, 1
      %s158 = scalar_select %p157, %s15, 1
      %s159 = smul.addr %s158, 2
      %s160 = smul.addr %s159, 4
      %s161 = scalar_lea.vmem %s2, %s160
      %p162 = pneg %p109
      %p163 = pneg %p106
      %p164 = scmp.lt.s32.totalorder %s15, 1
      %s165 = scalar_select %p164, %s15, 1
      %s166 = smul.addr %s165, 2
      %s167 = smul.addr %s166, 2
      %s168 = scalar_lea.vmem %s3, %s167
      %p169 = scmp.lt.s32.totalorder %s15, 1
      %s170 = scalar_select %p169, %s15, 1
      %s171 = smul.addr %s170, 6
      %s172 = smul.addr %s171, 4
      %s173 = scalar_lea.vmem %s0, %s172
      %p174 = scmp.lt.s32.totalorder %s15, 1
      %s175 = scalar_select %p174, %s15, 1
      %s176 = smul.addr %s175, 2
      %s177 = smul.addr %s176, 4
      %s178 = scalar_lea.vmem %s2, %s177
      %p179 = scmp.lt.s32.totalorder %s15, 1
      %s180 = scalar_select %p179, %s15, 1
      %s181 = smul.addr %s180, 2
      %s182 = smul.addr %s181, 2
      %s183 = scalar_lea.vmem %s3, %s182
      %v185 = vld [vmem:[%s173] sm:$0xff]
      %v186 = vld [vmem:[%s173 + $0x8] sm:$0xf]
      %v187 = vld [vmem:[%s1] sm:$0xff]
      %v188 = vld [vmem:[%s1 + $0x8] sm:$0xff]
      %v189 = vld [vmem:[%s1 + $0x10] sm:$0xff]
      %v190 = vld [vmem:[%s1 + $0x18] sm:$0xff]
      %v191 = vld [vmem:[%s1 + $0x20] sm:$0xff]
      %v192 = vld [vmem:[%s1 + $0x28] sm:$0xff]
      %v193 = vld [vmem:[%s1 + $0x30] sm:$0xff]
      %v194 = vld [vmem:[%s1 + $0x38] sm:$0xff]
      %v195 = vld [vmem:[%s1 + $0x40] sm:$0xff]
      %v196 = vld [vmem:[%s1 + $0x48] sm:$0xff]
      %v197 = vld [vmem:[%s1 + $0x50] sm:$0xff]
      %v198 = vld [vmem:[%s1 + $0x58] sm:$0xff]
      %v199 = vld [vmem:[%s1 + $0x60] sm:$0xff]
      %v200 = vld [vmem:[%s1 + $0x68] sm:$0xff]
      %v201 = vld [vmem:[%s1 + $0x70] sm:$0xff]
      %v202 = vld [vmem:[%s1 + $0x78] sm:$0xff]
      %v203 = vld [vmem:[%s1 + $0x80] sm:$0xff]
      %v204 = vld [vmem:[%s1 + $0x88] sm:$0xff]
      %v205 = vld [vmem:[%s1 + $0x90] sm:$0xff]
      %v206 = vld [vmem:[%s1 + $0x98] sm:$0xff]
      %v207 = vld [vmem:[%s1 + $0xa0] sm:$0xff]
      %v208 = vld [vmem:[%s1 + $0xa8] sm:$0xff]
      %v209 = vld [vmem:[%s1 + $0xb0] sm:$0xff]
      %v210 = vld [vmem:[%s1 + $0xb8] sm:$0xff]
      %v211 = vld [vmem:[%s1 + $0xc0] sm:$0xff]
      %v212 = vld [vmem:[%s1 + $0xc8] sm:$0xff]
      %v213 = vld [vmem:[%s1 + $0xd0] sm:$0xff]
      %v214 = vld [vmem:[%s1 + $0xd8] sm:$0xff]
      %v215 = vld [vmem:[%s1 + $0xe0] sm:$0xff]
      %v216 = vld [vmem:[%s1 + $0xe8] sm:$0xff]
      %v217 = vld [vmem:[%s1 + $0xf0] sm:$0xff]
      %v218 = vld [vmem:[%s1 + $0xf8] sm:$0xff]
      %v219 = vld [vmem:[%s1 + $0x100] sm:$0xff]
      %v220 = vld [vmem:[%s1 + $0x108] sm:$0xff]
      %v221 = vld [vmem:[%s1 + $0x110] sm:$0xff]
      %v222 = vld [vmem:[%s1 + $0x118] sm:$0xff]
      %v223 = vld [vmem:[%s1 + $0x120] sm:$0xff]
      %v224 = vld [vmem:[%s1 + $0x128] sm:$0xff]
      %v225 = vld [vmem:[%s1 + $0x130] sm:$0xff]
      %v226 = vld [vmem:[%s1 + $0x138] sm:$0xff]
      %v227 = vld [vmem:[%s173 + $0xc] sm:$0x11]
      %v228 = vld [vmem:[%s173 + $0x14] sm:$0x1]
      %s229 = scalar_lea.vmem %s1, 320
      %v230 = vld [vmem:[%s229] sm:$0xff]
      %v231 = vld [vmem:[%s229 + $0x8] sm:$0xff]
      %v232 = vld [vmem:[%s229 + $0x10] sm:$0xff]
      %v233 = vld [vmem:[%s229 + $0x18] sm:$0xff]
      %v234 = vld [vmem:[%s229 + $0x20] sm:$0xff]
      %v235 = vld [vmem:[%s229 + $0x28] sm:$0xff]
      %v236 = vld [vmem:[%s229 + $0x30] sm:$0xff]
      %v237 = vld [vmem:[%s229 + $0x38] sm:$0xff]
      %v238 = vld [vmem:[%s229 + $0x40] sm:$0xff]
      %v239 = vld [vmem:[%s229 + $0x48] sm:$0xff]
      %v240 = vld [vmem:[%s229 + $0x50] sm:$0xff]
      %v241 = vld [vmem:[%s229 + $0x58] sm:$0xff]
      %v242 = vld [vmem:[%s229 + $0x60] sm:$0xff]
      %v243 = vld [vmem:[%s229 + $0x68] sm:$0xff]
      %v244 = vld [vmem:[%s229 + $0x70] sm:$0xff]
      %v245 = vld [vmem:[%s229 + $0x78] sm:$0xff]
      %v246 = vld [vmem:[%s229 + $0x80] sm:$0xff]
      %v247 = vld [vmem:[%s229 + $0x88] sm:$0xff]
      %v248 = vld [vmem:[%s229 + $0x90] sm:$0xff]
      %v249 = vld [vmem:[%s229 + $0x98] sm:$0xff]
      %v250 = vld [vmem:[%s229 + $0xa0] sm:$0xff]
      %v251 = vld [vmem:[%s229 + $0xa8] sm:$0xff]
      %v252 = vld [vmem:[%s229 + $0xb0] sm:$0xff]
      %v253 = vld [vmem:[%s229 + $0xb8] sm:$0xff]
      %v254 = vld [vmem:[%s229 + $0xc0] sm:$0xff]
      %v255 = vld [vmem:[%s229 + $0xc8] sm:$0xff]
      %v256 = vld [vmem:[%s229 + $0xd0] sm:$0xff]
      %v257 = vld [vmem:[%s229 + $0xd8] sm:$0xff]
      %v258 = vld [vmem:[%s229 + $0xe0] sm:$0xff]
      %v259 = vld [vmem:[%s229 + $0xe8] sm:$0xff]
      %v260 = vld [vmem:[%s229 + $0xf0] sm:$0xff]
      %v261 = vld [vmem:[%s229 + $0xf8] sm:$0xff]
      %v262 = vld [vmem:[%s229 + $0x100] sm:$0xff]
      %v263 = vld [vmem:[%s229 + $0x108] sm:$0xff]
      %v264 = vld [vmem:[%s229 + $0x110] sm:$0xff]
      %v265 = vld [vmem:[%s229 + $0x118] sm:$0xff]
      %v266 = vld [vmem:[%s229 + $0x120] sm:$0xff]
      %v267 = vld [vmem:[%s229 + $0x128] sm:$0xff]
      %v268 = vld [vmem:[%s229 + $0x130] sm:$0xff]
      %v269 = vld [vmem:[%s229 + $0x138] sm:$0xff]
      %v274 = vunpack.c.l.b16 %v185
      %v275 = vunpack.c.h.b16 %v185
      %v276 = vunpack.c.l.b16 %v186
      %v277 = vunpack.c.l.b16 %v227
      %v278 = vunpack.c.h.b16 %v227
      %v279 = vunpack.c.l.b16 %v228
      %v280 = vpack.c.b16 %v277, %v274
      %v281 = vpack.c.b16 %v278, %v275
      %v282 = vpack.c.b16 %v279, %v276
      %v284 = vshrl.u32 %v280, 16
      %v286 = vshll.u32 %v280, 16
      %v288 = vrot.slane %v286, 1
      %v289 = vor.u32 %v284, %v288
      %v291 = vshrl.u32 %v281, 16
      %v293 = vshll.u32 %v281, 16
      %v295 = vrot.slane %v293, 1
      %v296 = vor.u32 %v291, %v295
      %v298 = vshrl.u32 %v282, 16
      %v300 = vshll.u32 %v282, 16
      %v302 = vrot.slane %v300, 1
      %v303 = vor.u32 %v298, %v302
      %v346 = vunpack.c.l.b16 %v230
      %v347 = vunpack.c.h.b16 %v230
      %v348 = vunpack.c.l.b16 %v231
      %v349 = vunpack.c.h.b16 %v231
      %v350 = vunpack.c.l.b16 %v232
      %v351 = vunpack.c.h.b16 %v232
      %v352 = vunpack.c.l.b16 %v233
      %v353 = vunpack.c.h.b16 %v233
      %v354 = vunpack.c.l.b16 %v234
      %v355 = vunpack.c.h.b16 %v234
      %v356 = vunpack.c.l.b16 %v235
      %v357 = vunpack.c.h.b16 %v235
      %v358 = vunpack.c.l.b16 %v236
      %v359 = vunpack.c.h.b16 %v236
      %v360 = vunpack.c.l.b16 %v237
      %v361 = vunpack.c.h.b16 %v237
      %v362 = vunpack.c.l.b16 %v238
      %v363 = vunpack.c.h.b16 %v238
      %v364 = vunpack.c.l.b16 %v239
      %v365 = vunpack.c.h.b16 %v239
      %v366 = vunpack.c.l.b16 %v240
      %v367 = vunpack.c.h.b16 %v240
      %v368 = vunpack.c.l.b16 %v241
      %v369 = vunpack.c.h.b16 %v241
      %v370 = vunpack.c.l.b16 %v242
      %v371 = vunpack.c.h.b16 %v242
      %v372 = vunpack.c.l.b16 %v243
      %v373 = vunpack.c.h.b16 %v243
      %v374 = vunpack.c.l.b16 %v244
      %v375 = vunpack.c.h.b16 %v244
      %v376 = vunpack.c.l.b16 %v245
      %v377 = vunpack.c.h.b16 %v245
      %v378 = vunpack.c.l.b16 %v246
      %v379 = vunpack.c.h.b16 %v246
      %v380 = vunpack.c.l.b16 %v247
      %v381 = vunpack.c.h.b16 %v247
      %v382 = vunpack.c.l.b16 %v248
      %v383 = vunpack.c.h.b16 %v248
      %v384 = vunpack.c.l.b16 %v249
      %v385 = vunpack.c.h.b16 %v249
      %v386 = vunpack.c.l.b16 %v250
      %v387 = vunpack.c.h.b16 %v250
      %v388 = vunpack.c.l.b16 %v251
      %v389 = vunpack.c.h.b16 %v251
      %v390 = vunpack.c.l.b16 %v252
      %v391 = vunpack.c.h.b16 %v252
      %v392 = vunpack.c.l.b16 %v253
      %v393 = vunpack.c.h.b16 %v253
      %v394 = vunpack.c.l.b16 %v254
      %v395 = vunpack.c.h.b16 %v254
      %v396 = vunpack.c.l.b16 %v255
      %v397 = vunpack.c.h.b16 %v255
      %v398 = vunpack.c.l.b16 %v256
      %v399 = vunpack.c.h.b16 %v256
      %v400 = vunpack.c.l.b16 %v257
      %v401 = vunpack.c.h.b16 %v257
      %v402 = vunpack.c.l.b16 %v258
      %v403 = vunpack.c.h.b16 %v258
      %v404 = vunpack.c.l.b16 %v259
      %v405 = vunpack.c.h.b16 %v259
      %v406 = vunpack.c.l.b16 %v260
      %v407 = vunpack.c.h.b16 %v260
      %v408 = vunpack.c.l.b16 %v261
      %v409 = vunpack.c.h.b16 %v261
      %v410 = vunpack.c.l.b16 %v262
      %v411 = vunpack.c.h.b16 %v262
      %v412 = vunpack.c.l.b16 %v263
      %v413 = vunpack.c.h.b16 %v263
      %v414 = vunpack.c.l.b16 %v264
      %v415 = vunpack.c.h.b16 %v264
      %v416 = vunpack.c.l.b16 %v265
      %v417 = vunpack.c.h.b16 %v265
      %v418 = vunpack.c.l.b16 %v266
      %v419 = vunpack.c.h.b16 %v266
      %v420 = vunpack.c.l.b16 %v267
      %v421 = vunpack.c.h.b16 %v267
      %v422 = vunpack.c.l.b16 %v268
      %v423 = vunpack.c.h.b16 %v268
      %v424 = vunpack.c.l.b16 %v269
      %v425 = vunpack.c.h.b16 %v269
      %v426 = vpack.c.b16 %v348, %v346
      %v427 = vpack.c.b16 %v349, %v347
      %v428 = vpack.c.b16 %v352, %v350
      %v429 = vpack.c.b16 %v353, %v351
      %v430 = vpack.c.b16 %v356, %v354
      %v431 = vpack.c.b16 %v357, %v355
      %v432 = vpack.c.b16 %v360, %v358
      %v433 = vpack.c.b16 %v361, %v359
      %v434 = vpack.c.b16 %v364, %v362
      %v435 = vpack.c.b16 %v365, %v363
      %v436 = vpack.c.b16 %v368, %v366
      %v437 = vpack.c.b16 %v369, %v367
      %v438 = vpack.c.b16 %v372, %v370
      %v439 = vpack.c.b16 %v373, %v371
      %v440 = vpack.c.b16 %v376, %v374
      %v441 = vpack.c.b16 %v377, %v375
      %v442 = vpack.c.b16 %v380, %v378
      %v443 = vpack.c.b16 %v381, %v379
      %v444 = vpack.c.b16 %v384, %v382
      %v445 = vpack.c.b16 %v385, %v383
      %v446 = vpack.c.b16 %v388, %v386
      %v447 = vpack.c.b16 %v389, %v387
      %v448 = vpack.c.b16 %v392, %v390
      %v449 = vpack.c.b16 %v393, %v391
      %v450 = vpack.c.b16 %v396, %v394
      %v451 = vpack.c.b16 %v397, %v395
      %v452 = vpack.c.b16 %v400, %v398
      %v453 = vpack.c.b16 %v401, %v399
      %v454 = vpack.c.b16 %v404, %v402
      %v455 = vpack.c.b16 %v405, %v403
      %v456 = vpack.c.b16 %v408, %v406
      %v457 = vpack.c.b16 %v409, %v407
      %v458 = vpack.c.b16 %v412, %v410
      %v459 = vpack.c.b16 %v413, %v411
      %v460 = vpack.c.b16 %v416, %v414
      %v461 = vpack.c.b16 %v417, %v415
      %v462 = vpack.c.b16 %v420, %v418
      %v463 = vpack.c.b16 %v421, %v419
      %v464 = vpack.c.b16 %v424, %v422
      %v465 = vpack.c.b16 %v425, %v423
      %vm506 = vcmask 523264
      %v508 = vsel %vm506, %v303, 0
      %510 = vmatprep.subr.bf16.mxu0 %v427
      %511 = vmatpush1.bf16.msra.mxu0 %v426
      %512 = vmatprep.subr.bf16.mxu0 %v429
      %513 = vmatpush1.bf16.msra.mxu0 %v428
      %514 = vmatprep.subr.bf16.mxu0 %v431
      %515 = vmatpush1.bf16.msra.mxu0 %v430
      %516 = vmatprep.subr.bf16.mxu0 %v433
      %517 = vmatpush1.bf16.msra.mxu0 %v432
      %518 = vmatprep.subr.bf16.mxu0 %v435
      %519 = vmatpush1.bf16.msra.mxu0 %v434
      %520 = vmatprep.subr.bf16.mxu0 %v437
      %521 = vmatpush1.bf16.msra.mxu0 %v436
      %522 = vmatprep.subr.bf16.mxu0 %v439
      %523 = vmatpush1.bf16.msra.mxu0 %v438
      %524 = vmatprep.subr.bf16.mxu0 %v441
      %525 = vmatpush1.bf16.msra.mxu0 %v440
      %526 = vmatprep.subr.bf16.mxu0 %v443
      %527 = vmatpush1.bf16.msra.mxu0 %v442
      %528 = vmatprep.subr.bf16.mxu0 %v445
      %529 = vmatpush1.bf16.msra.mxu0 %v444
      %530 = vmatprep.subr.bf16.mxu0 %v447
      %531 = vmatpush1.bf16.msra.mxu0 %v446
      %532 = vmatprep.subr.bf16.mxu0 %v449
      %533 = vmatpush1.bf16.msra.mxu0 %v448
      %534 = vmatprep.subr.bf16.mxu0 %v451
      %535 = vmatpush1.bf16.msra.mxu0 %v450
      %536 = vmatprep.subr.bf16.mxu0 %v453
      %537 = vmatpush1.bf16.msra.mxu0 %v452
      %538 = vmatprep.subr.bf16.mxu0 %v455
      %539 = vmatpush1.bf16.msra.mxu0 %v454
      %540 = vmatprep.subr.bf16.mxu0 %v457
      %541 = vmatpush1.bf16.msra.mxu0 %v456
      %542 = vmatprep.mubr.bf16.mxu0 %v296
      %543 = vmatmul.mubr.bf16.gmra.mrb[0].mxu0 %v289
      %v544 = vpop.f32.mrb[0].mxu0
      %v545 = vadd.f32 0.0, %v544
      %v546 = vpop.f32.mrb[0].mxu0
      %v547 = vadd.f32 0.0, %v546
      %v548 = vpop.f32.mrb[0].mxu0
      %v549 = vpop.f32.mrb[0].mxu0
      %550 = vdwg.mxu0
      %551 = vmatprep.subr.bf16.mxu0 %v459
      %552 = vmatpush1.bf16.msra.mxu0 %v458
      %553 = vmatprep.subr.bf16.mxu0 %v461
      %554 = vmatpush1.bf16.msra.mxu0 %v460
      %555 = vmatprep.subr.bf16.mxu0 %v463
      %556 = vmatpush1.bf16.msra.mxu0 %v462
      %557 = vmatprep.subr.bf16.mxu0 %v465
      %558 = vmatpush1.bf16.msra.mxu0 %v464
      %559 = vmatprep.subr.bf16.mxu0 0
      %560 = vmatpush1.bf16.msra.mxu0 0
      %561 = vmatprep.subr.bf16.mxu0 0
      %562 = vmatpush1.bf16.msra.mxu0 0
      %563 = vmatprep.subr.bf16.mxu0 0
      %564 = vmatpush1.bf16.msra.mxu0 0
      %565 = vmatprep.subr.bf16.mxu0 0
      %566 = vmatpush1.bf16.msra.mxu0 0
      %567 = vmatprep.subr.bf16.mxu0 0
      %568 = vmatpush1.bf16.msra.mxu0 0
      %569 = vmatprep.subr.bf16.mxu0 0
      %570 = vmatpush1.bf16.msra.mxu0 0
      %571 = vmatprep.subr.bf16.mxu0 0
      %572 = vmatpush1.bf16.msra.mxu0 0
      %573 = vmatprep.subr.bf16.mxu0 0
      %574 = vmatpush1.bf16.msra.mxu0 0
      %575 = vmatprep.subr.bf16.mxu0 0
      %576 = vmatpush1.bf16.msra.mxu0 0
      %577 = vmatprep.subr.bf16.mxu0 0
      %578 = vmatpush1.bf16.msra.mxu0 0
      %579 = vmatprep.subr.bf16.mxu0 0
      %580 = vmatpush1.bf16.msra.mxu0 0
      %581 = vmatprep.subr.bf16.mxu0 0
      %582 = vmatpush1.bf16.msra.mxu0 0
      %583 = vmatprep.mubr.bf16.mxu0 0
      %584 = vmatmul.mubr.bf16.gmra.mrb[0].mxu0 %v508
      %v585 = vpop.f32.mrb[0].mxu0
      %v586 = vadd.f32 %v545, %v585
      %v587 = vpop.f32.mrb[0].mxu0
      %v588 = vadd.f32 %v547, %v587
      %v589 = vpop.f32.mrb[0].mxu0
      %v590 = vpop.f32.mrb[0].mxu0
      %591 = vdwg.mxu0
      %v592 = vpack.c.b16 %v274, %v274
      %v593 = vpack.c.b16 %v275, %v275
      %v594 = vpack.c.b16 %v276, %v276
      %v637 = vunpack.c.l.b16 %v187
      %v638 = vunpack.c.h.b16 %v187
      %v639 = vunpack.c.l.b16 %v188
      %v640 = vunpack.c.h.b16 %v188
      %v641 = vunpack.c.l.b16 %v189
      %v642 = vunpack.c.h.b16 %v189
      %v643 = vunpack.c.l.b16 %v190
      %v644 = vunpack.c.h.b16 %v190
      %v645 = vunpack.c.l.b16 %v191
      %v646 = vunpack.c.h.b16 %v191
      %v647 = vunpack.c.l.b16 %v192
      %v648 = vunpack.c.h.b16 %v192
      %v649 = vunpack.c.l.b16 %v193
      %v650 = vunpack.c.h.b16 %v193
      %v651 = vunpack.c.l.b16 %v194
      %v652 = vunpack.c.h.b16 %v194
      %v653 = vunpack.c.l.b16 %v195
      %v654 = vunpack.c.h.b16 %v195
      %v655 = vunpack.c.l.b16 %v196
      %v656 = vunpack.c.h.b16 %v196
      %v657 = vunpack.c.l.b16 %v197
      %v658 = vunpack.c.h.b16 %v197
      %v659 = vunpack.c.l.b16 %v198
      %v660 = vunpack.c.h.b16 %v198
      %v661 = vunpack.c.l.b16 %v199
      %v662 = vunpack.c.h.b16 %v199
      %v663 = vunpack.c.l.b16 %v200
      %v664 = vunpack.c.h.b16 %v200
      %v665 = vunpack.c.l.b16 %v201
      %v666 = vunpack.c.h.b16 %v201
      %v667 = vunpack.c.l.b16 %v202
      %v668 = vunpack.c.h.b16 %v202
      %v669 = vunpack.c.l.b16 %v203
      %v670 = vunpack.c.h.b16 %v203
      %v671 = vunpack.c.l.b16 %v204
      %v672 = vunpack.c.h.b16 %v204
      %v673 = vunpack.c.l.b16 %v205
      %v674 = vunpack.c.h.b16 %v205
      %v675 = vunpack.c.l.b16 %v206
      %v676 = vunpack.c.h.b16 %v206
      %v677 = vunpack.c.l.b16 %v207
      %v678 = vunpack.c.h.b16 %v207
      %v679 = vunpack.c.l.b16 %v208
      %v680 = vunpack.c.h.b16 %v208
      %v681 = vunpack.c.l.b16 %v209
      %v682 = vunpack.c.h.b16 %v209
      %v683 = vunpack.c.l.b16 %v210
      %v684 = vunpack.c.h.b16 %v210
      %v685 = vunpack.c.l.b16 %v211
      %v686 = vunpack.c.h.b16 %v211
      %v687 = vunpack.c.l.b16 %v212
      %v688 = vunpack.c.h.b16 %v212
      %v689 = vunpack.c.l.b16 %v213
      %v690 = vunpack.c.h.b16 %v213
      %v691 = vunpack.c.l.b16 %v214
      %v692 = vunpack.c.h.b16 %v214
      %v693 = vunpack.c.l.b16 %v215
      %v694 = vunpack.c.h.b16 %v215
      %v695 = vunpack.c.l.b16 %v216
      %v696 = vunpack.c.h.b16 %v216
      %v697 = vunpack.c.l.b16 %v217
      %v698 = vunpack.c.h.b16 %v217
      %v699 = vunpack.c.l.b16 %v218
      %v700 = vunpack.c.h.b16 %v218
      %v701 = vunpack.c.l.b16 %v219
      %v702 = vunpack.c.h.b16 %v219
      %v703 = vunpack.c.l.b16 %v220
      %v704 = vunpack.c.h.b16 %v220
      %v705 = vunpack.c.l.b16 %v221
      %v706 = vunpack.c.h.b16 %v221
      %v707 = vunpack.c.l.b16 %v222
      %v708 = vunpack.c.h.b16 %v222
      %v709 = vunpack.c.l.b16 %v223
      %v710 = vunpack.c.h.b16 %v223
      %v711 = vunpack.c.l.b16 %v224
      %v712 = vunpack.c.h.b16 %v224
      %v713 = vunpack.c.l.b16 %v225
      %v714 = vunpack.c.h.b16 %v225
      %v715 = vunpack.c.l.b16 %v226
      %v716 = vunpack.c.h.b16 %v226
      %v717 = vpack.c.b16 %v639, %v637
      %v718 = vpack.c.b16 %v640, %v638
      %v719 = vpack.c.b16 %v643, %v641
      %v720 = vpack.c.b16 %v644, %v642
      %v721 = vpack.c.b16 %v647, %v645
      %v722 = vpack.c.b16 %v648, %v646
      %v723 = vpack.c.b16 %v651, %v649
      %v724 = vpack.c.b16 %v652, %v650
      %v725 = vpack.c.b16 %v655, %v653
      %v726 = vpack.c.b16 %v656, %v654
      %v727 = vpack.c.b16 %v659, %v657
      %v728 = vpack.c.b16 %v660, %v658
      %v729 = vpack.c.b16 %v663, %v661
      %v730 = vpack.c.b16 %v664, %v662
      %v731 = vpack.c.b16 %v667, %v665
      %v732 = vpack.c.b16 %v668, %v666
      %v733 = vpack.c.b16 %v671, %v669
      %v734 = vpack.c.b16 %v672, %v670
      %v735 = vpack.c.b16 %v675, %v673
      %v736 = vpack.c.b16 %v676, %v674
      %v737 = vpack.c.b16 %v679, %v677
      %v738 = vpack.c.b16 %v680, %v678
      %v739 = vpack.c.b16 %v683, %v681
      %v740 = vpack.c.b16 %v684, %v682
      %v741 = vpack.c.b16 %v687, %v685
      %v742 = vpack.c.b16 %v688, %v686
      %v743 = vpack.c.b16 %v691, %v689
      %v744 = vpack.c.b16 %v692, %v690
      %v745 = vpack.c.b16 %v695, %v693
      %v746 = vpack.c.b16 %v696, %v694
      %v747 = vpack.c.b16 %v699, %v697
      %v748 = vpack.c.b16 %v700, %v698
      %v749 = vpack.c.b16 %v703, %v701
      %v750 = vpack.c.b16 %v704, %v702
      %v751 = vpack.c.b16 %v707, %v705
      %v752 = vpack.c.b16 %v708, %v706
      %v753 = vpack.c.b16 %v711, %v709
      %v754 = vpack.c.b16 %v712, %v710
      %v755 = vpack.c.b16 %v715, %v713
      %v756 = vpack.c.b16 %v716, %v714
      %v798 = vsel %vm506, %v594, 0
      %800 = vmatprep.subr.bf16.mxu0 %v718
      %801 = vmatpush1.bf16.msra.mxu0 %v717
      %802 = vmatprep.subr.bf16.mxu0 %v720
      %803 = vmatpush1.bf16.msra.mxu0 %v719
      %804 = vmatprep.subr.bf16.mxu0 %v722
      %805 = vmatpush1.bf16.msra.mxu0 %v721
      %806 = vmatprep.subr.bf16.mxu0 %v724
      %807 = vmatpush1.bf16.msra.mxu0 %v723
      %808 = vmatprep.subr.bf16.mxu0 %v726
      %809 = vmatpush1.bf16.msra.mxu0 %v725
      %810 = vmatprep.subr.bf16.mxu0 %v728
      %811 = vmatpush1.bf16.msra.mxu0 %v727
      %812 = vmatprep.subr.bf16.mxu0 %v730
      %813 = vmatpush1.bf16.msra.mxu0 %v729
      %814 = vmatprep.subr.bf16.mxu0 %v732
      %815 = vmatpush1.bf16.msra.mxu0 %v731
      %816 = vmatprep.subr.bf16.mxu0 %v734
      %817 = vmatpush1.bf16.msra.mxu0 %v733
      %818 = vmatprep.subr.bf16.mxu0 %v736
      %819 = vmatpush1.bf16.msra.mxu0 %v735
      %820 = vmatprep.subr.bf16.mxu0 %v738
      %821 = vmatpush1.bf16.msra.mxu0 %v737
      %822 = vmatprep.subr.bf16.mxu0 %v740
      %823 = vmatpush1.bf16.msra.mxu0 %v739
      %824 = vmatprep.subr.bf16.mxu0 %v742
      %825 = vmatpush1.bf16.msra.mxu0 %v741
      %826 = vmatprep.subr.bf16.mxu0 %v744
      %827 = vmatpush1.bf16.msra.mxu0 %v743
      %828 = vmatprep.subr.bf16.mxu0 %v746
      %829 = vmatpush1.bf16.msra.mxu0 %v745
      %830 = vmatprep.subr.bf16.mxu0 %v748
      %831 = vmatpush1.bf16.msra.mxu0 %v747
      %832 = vmatprep.mubr.bf16.mxu0 %v593
      %833 = vmatmul.mubr.bf16.gmra.mrb[0].mxu0 %v592
      %v834 = vpop.f32.mrb[0].mxu0
      %v835 = vadd.f32 %v586, %v834
      %v836 = vpop.f32.mrb[0].mxu0
      %v837 = vadd.f32 %v588, %v836
      %v838 = vpop.f32.mrb[0].mxu0
      %v839 = vpop.f32.mrb[0].mxu0
      %840 = vdwg.mxu0
      %841 = vmatprep.subr.bf16.mxu0 %v750
      %842 = vmatpush1.bf16.msra.mxu0 %v749
      %843 = vmatprep.subr.bf16.mxu0 %v752
      %844 = vmatpush1.bf16.msra.mxu0 %v751
      %845 = vmatprep.subr.bf16.mxu0 %v754
      %846 = vmatpush1.bf16.msra.mxu0 %v753
      %847 = vmatprep.subr.bf16.mxu0 %v756
      %848 = vmatpush1.bf16.msra.mxu0 %v755
      %849 = vmatprep.subr.bf16.mxu0 0
      %850 = vmatpush1.bf16.msra.mxu0 0
      %851 = vmatprep.subr.bf16.mxu0 0
      %852 = vmatpush1.bf16.msra.mxu0 0
      %853 = vmatprep.subr.bf16.mxu0 0
      %854 = vmatpush1.bf16.msra.mxu0 0
      %855 = vmatprep.subr.bf16.mxu0 0
      %856 = vmatpush1.bf16.msra.mxu0 0
      %857 = vmatprep.subr.bf16.mxu0 0
      %858 = vmatpush1.bf16.msra.mxu0 0
      %859 = vmatprep.subr.bf16.mxu0 0
      %860 = vmatpush1.bf16.msra.mxu0 0
      %861 = vmatprep.subr.bf16.mxu0 0
      %862 = vmatpush1.bf16.msra.mxu0 0
      %863 = vmatprep.subr.bf16.mxu0 0
      %864 = vmatpush1.bf16.msra.mxu0 0
      %865 = vmatprep.subr.bf16.mxu0 0
      %866 = vmatpush1.bf16.msra.mxu0 0
      %867 = vmatprep.subr.bf16.mxu0 0
      %868 = vmatpush1.bf16.msra.mxu0 0
      %869 = vmatprep.subr.bf16.mxu0 0
      %870 = vmatpush1.bf16.msra.mxu0 0
      %871 = vmatprep.subr.bf16.mxu0 0
      %872 = vmatpush1.bf16.msra.mxu0 0
      %873 = vmatprep.mubr.bf16.mxu0 0
      %874 = vmatmul.mubr.bf16.gmra.mrb[0].mxu0 %v798
      %v875 = vpop.f32.mrb[0].mxu0
      %v876 = vadd.f32 %v835, %v875
      %v877 = vpop.f32.mrb[0].mxu0
      %v878 = vadd.f32 %v837, %v877
      %v879 = vpop.f32.mrb[0].mxu0
      %v880 = vpop.f32.mrb[0].mxu0
      %881 = vdwg.mxu0
      %v882 = vld [vmem:[%s173] sm:$0xee]
      %v883 = vld [vmem:[%s173 + $0x8] sm:$0xe]
      %s884 = scalar_lea.vmem %s1, 640
      %v885 = vld [vmem:[%s884] sm:$0xff]
      %v886 = vld [vmem:[%s884 + $0x8] sm:$0xff]
      %v887 = vld [vmem:[%s884 + $0x10] sm:$0xff]
      %v888 = vld [vmem:[%s884 + $0x18] sm:$0xff]
      %v889 = vld [vmem:[%s884 + $0x20] sm:$0xff]
      %v890 = vld [vmem:[%s884 + $0x28] sm:$0xff]
      %v891 = vld [vmem:[%s884 + $0x30] sm:$0xff]
      %v892 = vld [vmem:[%s884 + $0x38] sm:$0xff]
      %v893 = vld [vmem:[%s884 + $0x40] sm:$0xff]
      %v894 = vld [vmem:[%s884 + $0x48] sm:$0xff]
      %v895 = vld [vmem:[%s884 + $0x50] sm:$0xff]
      %v896 = vld [vmem:[%s884 + $0x58] sm:$0xff]
      %v897 = vld [vmem:[%s884 + $0x60] sm:$0xff]
      %v898 = vld [vmem:[%s884 + $0x68] sm:$0xff]
      %v899 = vld [vmem:[%s884 + $0x70] sm:$0xff]
      %v900 = vld [vmem:[%s884 + $0x78] sm:$0xff]
      %v901 = vld [vmem:[%s884 + $0x80] sm:$0xff]
      %v902 = vld [vmem:[%s884 + $0x88] sm:$0xff]
      %v903 = vld [vmem:[%s884 + $0x90] sm:$0xff]
      %v904 = vld [vmem:[%s884 + $0x98] sm:$0xff]
      %v905 = vld [vmem:[%s884 + $0xa0] sm:$0xff]
      %v906 = vld [vmem:[%s884 + $0xa8] sm:$0xff]
      %v907 = vld [vmem:[%s884 + $0xb0] sm:$0xff]
      %v908 = vld [vmem:[%s884 + $0xb8] sm:$0xff]
      %v909 = vld [vmem:[%s884 + $0xc0] sm:$0xff]
      %v910 = vld [vmem:[%s884 + $0xc8] sm:$0xff]
      %v911 = vld [vmem:[%s884 + $0xd0] sm:$0xff]
      %v912 = vld [vmem:[%s884 + $0xd8] sm:$0xff]
      %v913 = vld [vmem:[%s884 + $0xe0] sm:$0xff]
      %v914 = vld [vmem:[%s884 + $0xe8] sm:$0xff]
      %v915 = vld [vmem:[%s884 + $0xf0] sm:$0xff]
      %v916 = vld [vmem:[%s884 + $0xf8] sm:$0xff]
      %v917 = vld [vmem:[%s884 + $0x100] sm:$0xff]
      %v918 = vld [vmem:[%s884 + $0x108] sm:$0xff]
      %v919 = vld [vmem:[%s884 + $0x110] sm:$0xff]
      %v920 = vld [vmem:[%s884 + $0x118] sm:$0xff]
      %v921 = vld [vmem:[%s884 + $0x120] sm:$0xff]
      %v922 = vld [vmem:[%s884 + $0x128] sm:$0xff]
      %v923 = vld [vmem:[%s884 + $0x130] sm:$0xff]
      %v924 = vld [vmem:[%s884 + $0x138] sm:$0xff]
      %v927 = vunpack.c.l.b16 %v882
      %v928 = vunpack.c.h.b16 %v882
      %v929 = vunpack.c.l.b16 %v883
      %v930 = vpack.c.b16 %v277, %v927
      %v931 = vpack.c.b16 %v278, %v928
      %v932 = vpack.c.b16 %v279, %v929
      %v933 = vrot.slane %v930, 1
      %v934 = vrot.slane %v931, 1
      %v935 = vrot.slane %v932, 1
      %v978 = vunpack.c.l.b16 %v885
      %v979 = vunpack.c.h.b16 %v885
      %v980 = vunpack.c.l.b16 %v886
      %v981 = vunpack.c.h.b16 %v886
      %v982 = vunpack.c.l.b16 %v887
      %v983 = vunpack.c.h.b16 %v887
      %v984 = vunpack.c.l.b16 %v888
      %v985 = vunpack.c.h.b16 %v888
      %v986 = vunpack.c.l.b16 %v889
      %v987 = vunpack.c.h.b16 %v889
      %v988 = vunpack.c.l.b16 %v890
      %v989 = vunpack.c.h.b16 %v890
      %v990 = vunpack.c.l.b16 %v891
      %v991 = vunpack.c.h.b16 %v891
      %v992 = vunpack.c.l.b16 %v892
      %v993 = vunpack.c.h.b16 %v892
      %v994 = vunpack.c.l.b16 %v893
      %v995 = vunpack.c.h.b16 %v893
      %v996 = vunpack.c.l.b16 %v894
      %v997 = vunpack.c.h.b16 %v894
      %v998 = vunpack.c.l.b16 %v895
      %v999 = vunpack.c.h.b16 %v895
      %v1000 = vunpack.c.l.b16 %v896
      %v1001 = vunpack.c.h.b16 %v896
      %v1002 = vunpack.c.l.b16 %v897
      %v1003 = vunpack.c.h.b16 %v897
      %v1004 = vunpack.c.l.b16 %v898
      %v1005 = vunpack.c.h.b16 %v898
      %v1006 = vunpack.c.l.b16 %v899
      %v1007 = vunpack.c.h.b16 %v899
      %v1008 = vunpack.c.l.b16 %v900
      %v1009 = vunpack.c.h.b16 %v900
      %v1010 = vunpack.c.l.b16 %v901
      %v1011 = vunpack.c.h.b16 %v901
      %v1012 = vunpack.c.l.b16 %v902
      %v1013 = vunpack.c.h.b16 %v902
      %v1014 = vunpack.c.l.b16 %v903
      %v1015 = vunpack.c.h.b16 %v903
      %v1016 = vunpack.c.l.b16 %v904
      %v1017 = vunpack.c.h.b16 %v904
      %v1018 = vunpack.c.l.b16 %v905
      %v1019 = vunpack.c.h.b16 %v905
      %v1020 = vunpack.c.l.b16 %v906
      %v1021 = vunpack.c.h.b16 %v906
      %v1022 = vunpack.c.l.b16 %v907
      %v1023 = vunpack.c.h.b16 %v907
      %v1024 = vunpack.c.l.b16 %v908
      %v1025 = vunpack.c.h.b16 %v908
      %v1026 = vunpack.c.l.b16 %v909
      %v1027 = vunpack.c.h.b16 %v909
      %v1028 = vunpack.c.l.b16 %v910
      %v1029 = vunpack.c.h.b16 %v910
      %v1030 = vunpack.c.l.b16 %v911
      %v1031 = vunpack.c.h.b16 %v911
      %v1032 = vunpack.c.l.b16 %v912
      %v1033 = vunpack.c.h.b16 %v912
      %v1034 = vunpack.c.l.b16 %v913
      %v1035 = vunpack.c.h.b16 %v913
      %v1036 = vunpack.c.l.b16 %v914
      %v1037 = vunpack.c.h.b16 %v914
      %v1038 = vunpack.c.l.b16 %v915
      %v1039 = vunpack.c.h.b16 %v915
      %v1040 = vunpack.c.l.b16 %v916
      %v1041 = vunpack.c.h.b16 %v916
      %v1042 = vunpack.c.l.b16 %v917
      %v1043 = vunpack.c.h.b16 %v917
      %v1044 = vunpack.c.l.b16 %v918
      %v1045 = vunpack.c.h.b16 %v918
      %v1046 = vunpack.c.l.b16 %v919
      %v1047 = vunpack.c.h.b16 %v919
      %v1048 = vunpack.c.l.b16 %v920
      %v1049 = vunpack.c.h.b16 %v920
      %v1050 = vunpack.c.l.b16 %v921
      %v1051 = vunpack.c.h.b16 %v921
      %v1052 = vunpack.c.l.b16 %v922
      %v1053 = vunpack.c.h.b16 %v922
      %v1054 = vunpack.c.l.b16 %v923
      %v1055 = vunpack.c.h.b16 %v923
      %v1056 = vunpack.c.l.b16 %v924
      %v1057 = vunpack.c.h.b16 %v924
      %v1058 = vpack.c.b16 %v980, %v978
      %v1059 = vpack.c.b16 %v981, %v979
      %v1060 = vpack.c.b16 %v984, %v982
      %v1061 = vpack.c.b16 %v985, %v983
      %v1062 = vpack.c.b16 %v988, %v986
      %v1063 = vpack.c.b16 %v989, %v987
      %v1064 = vpack.c.b16 %v992, %v990
      %v1065 = vpack.c.b16 %v993, %v991
      %v1066 = vpack.c.b16 %v996, %v994
      %v1067 = vpack.c.b16 %v997, %v995
      %v1068 = vpack.c.b16 %v1000, %v998
      %v1069 = vpack.c.b16 %v1001, %v999
      %v1070 = vpack.c.b16 %v1004, %v1002
      %v1071 = vpack.c.b16 %v1005, %v1003
      %v1072 = vpack.c.b16 %v1008, %v1006
      %v1073 = vpack.c.b16 %v1009, %v1007
      %v1074 = vpack.c.b16 %v1012, %v1010
      %v1075 = vpack.c.b16 %v1013, %v1011
      %v1076 = vpack.c.b16 %v1016, %v1014
      %v1077 = vpack.c.b16 %v1017, %v1015
      %v1078 = vpack.c.b16 %v1020, %v1018
      %v1079 = vpack.c.b16 %v1021, %v1019
      %v1080 = vpack.c.b16 %v1024, %v1022
      %v1081 = vpack.c.b16 %v1025, %v1023
      %v1082 = vpack.c.b16 %v1028, %v1026
      %v1083 = vpack.c.b16 %v1029, %v1027
      %v1084 = vpack.c.b16 %v1032, %v1030
      %v1085 = vpack.c.b16 %v1033, %v1031
      %v1086 = vpack.c.b16 %v1036, %v1034
      %v1087 = vpack.c.b16 %v1037, %v1035
      %v1088 = vpack.c.b16 %v1040, %v1038
      %v1089 = vpack.c.b16 %v1041, %v1039
      %v1090 = vpack.c.b16 %v1044, %v1042
      %v1091 = vpack.c.b16 %v1045, %v1043
      %v1092 = vpack.c.b16 %v1048, %v1046
      %v1093 = vpack.c.b16 %v1049, %v1047
      %v1094 = vpack.c.b16 %v1052, %v1050
      %v1095 = vpack.c.b16 %v1053, %v1051
      %v1096 = vpack.c.b16 %v1056, %v1054
      %v1097 = vpack.c.b16 %v1057, %v1055
      %v1139 = vsel %vm506, %v935, 0
      %1141 = vmatprep.subr.bf16.mxu0 %v1059
      %1142 = vmatpush1.bf16.msra.mxu0 %v1058
      %1143 = vmatprep.subr.bf16.mxu0 %v1061
      %1144 = vmatpush1.bf16.msra.mxu0 %v1060
      %1145 = vmatprep.subr.bf16.mxu0 %v1063
      %1146 = vmatpush1.bf16.msra.mxu0 %v1062
      %1147 = vmatprep.subr.bf16.mxu0 %v1065
      %1148 = vmatpush1.bf16.msra.mxu0 %v1064
      %1149 = vmatprep.subr.bf16.mxu0 %v1067
      %1150 = vmatpush1.bf16.msra.mxu0 %v1066
      %1151 = vmatprep.subr.bf16.mxu0 %v1069
      %1152 = vmatpush1.bf16.msra.mxu0 %v1068
      %1153 = vmatprep.subr.bf16.mxu0 %v1071
      %1154 = vmatpush1.bf16.msra.mxu0 %v1070
      %1155 = vmatprep.subr.bf16.mxu0 %v1073
      %1156 = vmatpush1.bf16.msra.mxu0 %v1072
      %1157 = vmatprep.subr.bf16.mxu0 %v1075
      %1158 = vmatpush1.bf16.msra.mxu0 %v1074
      %1159 = vmatprep.subr.bf16.mxu0 %v1077
      %1160 = vmatpush1.bf16.msra.mxu0 %v1076
      %1161 = vmatprep.subr.bf16.mxu0 %v1079
      %1162 = vmatpush1.bf16.msra.mxu0 %v1078
      %1163 = vmatprep.subr.bf16.mxu0 %v1081
      %1164 = vmatpush1.bf16.msra.mxu0 %v1080
      %1165 = vmatprep.subr.bf16.mxu0 %v1083
      %1166 = vmatpush1.bf16.msra.mxu0 %v1082
      %1167 = vmatprep.subr.bf16.mxu0 %v1085
      %1168 = vmatpush1.bf16.msra.mxu0 %v1084
      %1169 = vmatprep.subr.bf16.mxu0 %v1087
      %1170 = vmatpush1.bf16.msra.mxu0 %v1086
      %1171 = vmatprep.subr.bf16.mxu0 %v1089
      %1172 = vmatpush1.bf16.msra.mxu0 %v1088
      %1173 = vmatprep.mubr.bf16.mxu0 %v934
      %1174 = vmatmul.mubr.bf16.gmra.mrb[0].mxu0 %v933
      %v1175 = vpop.f32.mrb[0].mxu0
      %v1176 = vadd.f32 0.0, %v1175
      %v1177 = vpop.f32.mrb[0].mxu0
      %v1178 = vadd.f32 0.0, %v1177
      %v1179 = vpop.f32.mrb[0].mxu0
      %v1180 = vpop.f32.mrb[0].mxu0
      %1181 = vdwg.mxu0
      %1182 = vmatprep.subr.bf16.mxu0 %v1091
      %1183 = vmatpush1.bf16.msra.mxu0 %v1090
      %1184 = vmatprep.subr.bf16.mxu0 %v1093
      %1185 = vmatpush1.bf16.msra.mxu0 %v1092
      %1186 = vmatprep.subr.bf16.mxu0 %v1095
      %1187 = vmatpush1.bf16.msra.mxu0 %v1094
      %1188 = vmatprep.subr.bf16.mxu0 %v1097
      %1189 = vmatpush1.bf16.msra.mxu0 %v1096
      %1190 = vmatprep.subr.bf16.mxu0 0
      %1191 = vmatpush1.bf16.msra.mxu0 0
      %1192 = vmatprep.subr.bf16.mxu0 0
      %1193 = vmatpush1.bf16.msra.mxu0 0
      %1194 = vmatprep.subr.bf16.mxu0 0
      %1195 = vmatpush1.bf16.msra.mxu0 0
      %1196 = vmatprep.subr.bf16.mxu0 0
      %1197 = vmatpush1.bf16.msra.mxu0 0
      %1198 = vmatprep.subr.bf16.mxu0 0
      %1199 = vmatpush1.bf16.msra.mxu0 0
      %1200 = vmatprep.subr.bf16.mxu0 0
      %1201 = vmatpush1.bf16.msra.mxu0 0
      %1202 = vmatprep.subr.bf16.mxu0 0
      %1203 = vmatpush1.bf16.msra.mxu0 0
      %1204 = vmatprep.subr.bf16.mxu0 0
      %1205 = vmatpush1.bf16.msra.mxu0 0
      %1206 = vmatprep.subr.bf16.mxu0 0
      %1207 = vmatpush1.bf16.msra.mxu0 0
      %1208 = vmatprep.subr.bf16.mxu0 0
      %1209 = vmatpush1.bf16.msra.mxu0 0
      %1210 = vmatprep.subr.bf16.mxu0 0
      %1211 = vmatpush1.bf16.msra.mxu0 0
      %1212 = vmatprep.subr.bf16.mxu0 0
      %1213 = vmatpush1.bf16.msra.mxu0 0
      %1214 = vmatprep.mubr.bf16.mxu0 0
      %1215 = vmatmul.mubr.bf16.gmra.mrb[0].mxu0 %v1139
      %v1216 = vpop.f32.mrb[0].mxu0
      %v1217 = vadd.f32 %v1176, %v1216
      %v1218 = vpop.f32.mrb[0].mxu0
      %v1219 = vadd.f32 %v1178, %v1218
      %v1220 = vpop.f32.mrb[0].mxu0
      %v1221 = vpop.f32.mrb[0].mxu0
      %1222 = vdwg.mxu0
      %v1223 = vadd.f32 %v876, %v1217
      %v1224 = vadd.f32 %v878, %v1219
      %v1225 = vpack.c.bf16 %v1223, %v1223
      %v1226 = vpack.c.bf16 %v1224, %v1224
      %v1229 = vunpack.c.l.b16 %v1225
      %v1230 = vunpack.c.l.b16 %v1226
      %v1231 = vpack.c.b16 %v1230, %v1229
      %1233 = vst [vmem:[%s178] sm:$0xff] %v1231
      %v1234 = vrot.slane %v1223, 4
      %v1235 = vadd.f32 %v1223, %v1234
      %v1236 = vrot.slane %v1235, 2
      %v1237 = vadd.f32 %v1235, %v1236
      %v1238 = vrot.slane %v1237, 1
      %v1239 = vadd.f32 %v1237, %v1238
      %v1240 = vrot.slane %v1224, 4
      %v1241 = vadd.f32 %v1224, %v1240
      %v1242 = vrot.slane %v1241, 2
      %v1243 = vadd.f32 %v1241, %v1242
      %v1244 = vrot.slane %v1243, 1
      %v1245 = vadd.f32 %v1243, %v1244
      %v1246 = vadd.f32 %v1239, 0.0
      %v1247 = vadd.f32 %v1245, 0.0
      %v1248 = vmul.f32 %v1223, %v1223
      %v1249 = vmul.f32 %v1224, %v1224
      %v1250 = vrot.slane %v1248, 4
      %v1251 = vadd.f32 %v1248, %v1250
      %v1252 = vrot.slane %v1251, 2
      %v1253 = vadd.f32 %v1251, %v1252
      %v1254 = vrot.slane %v1253, 1
      %v1255 = vadd.f32 %v1253, %v1254
      %v1256 = vrot.slane %v1249, 4
      %v1257 = vadd.f32 %v1249, %v1256
      %v1258 = vrot.slane %v1257, 2
      %v1259 = vadd.f32 %v1257, %v1258
      %v1260 = vrot.slane %v1259, 1
      %v1261 = vadd.f32 %v1259, %v1260
      %v1262 = vadd.f32 %v1255, 0.0
      %v1263 = vadd.f32 %v1261, 0.0
      %v1266 = vcombine.low %v1246, %v1247
      %v1268 = vunpack.c.l.s4 1966171168
      %v1269 = vunpack.c.0.s8 %v1268
      %v1270 = vlaneseq
      %v1271 = vshrl.u32 %v1270, 7
      %v1272 = vsub.s32 %v1269, %v1271
      %v1273 = vrot.slane %v1266, %v1272
      %v1275 = vunpack.c.l.s4 1966171168
      %v1276 = vunpack.c.0.s8 %v1275
      %v1277 = vlaneseq
      %v1278 = vshrl.u32 %v1277, 7
      %v1279 = vsub.s32 %v1276, %v1278
      %v1280 = vrot.slane %v1273, %v1279
      %v1282 = vlaneseq
      %vm1283 = vcmp.ge.s32.totalorder %v1282, 0
      %vm1284 = vcmp.lt.s32.totalorder %v1282, 256
      %vm1285 = vmand %vm1283, %vm1284
      %1286 = vst.msk [vmem:[%s183] ss:$2 sm:$0x3] %vm1285, %v1280
      %v1289 = vcombine.low %v1262, %v1263
      %v1291 = vunpack.c.l.s4 1966171168
      %v1292 = vunpack.c.0.s8 %v1291
      %v1293 = vlaneseq
      %v1294 = vshrl.u32 %v1293, 7
      %v1295 = vsub.s32 %v1292, %v1294
      %v1296 = vrot.slane %v1289, %v1295
      %v1298 = vunpack.c.l.s4 1966171168
      %v1299 = vunpack.c.0.s8 %v1298
      %v1300 = vlaneseq
      %v1301 = vshrl.u32 %v1300, 7
      %v1302 = vsub.s32 %v1299, %v1301
      %v1303 = vrot.slane %v1296, %v1302
      %s1305 = scalar_lea.vmem %s183, 1
      %1306 = vst.msk [vmem:[%s1305] ss:$2 sm:$0x3] %vm1285, %v1303
      %p1307 = scmp.lt.s32.totalorder %s15, 1
      %s1308 = scalar_select %p1307, %s15, 1
      %s1309 = smul.addr %s1308, 2
      %s1310 = smul.addr %s1309, 4
      %s1311 = scalar_lea.vmem %s2, %s1310
      %p1312 = scmp.lt.s32.totalorder %s15, 1
      %s1313 = scalar_select %p1312, %s15, 1
      %s1314 = smul.addr %s1313, 2
      %s1315 = smul.addr %s1314, 2
      %s1316 = scalar_lea.vmem %s3, %s1315
      // Predicated region
      $region29: #{down_block.6} parent=27 // pred_check
        %p1317 = pneg %p80
      $region30: #{down_block.6} parent=27 // pred_check_branch
        %1319 = sbr.rel (%p1317) target = $region32
      $region31: #{down_block.6} parent=27 // pred_region
        _
      $region32: #{down_block.6} parent=27 // pred_fallthru
        _
      // Predicated region
      $region33: #{down_block.6} parent=27 // pred_check
        %p1320 = pneg %p106
      $region34: #{down_block.6} parent=27 // pred_check_branch
        %1322 = sbr.rel (%p1320) target = $region36
      $region35: #{down_block.6} parent=27 // pred_region
        _
      $region36: #{down_block.6} parent=27 // pred_fallthru
        _
    $region28: #{down_block.6} parent=5 // pred_fallthru
      _
    %p1323 = scmp.le.s32.totalorder 2, %s10
    // Predicated region
    $region37: #{down_block.6} parent=5 // pred_check
      %p1324 = pneg %p1323
    $region38: #{down_block.6} parent=5 // pred_check_branch
      %1326 = sbr.rel (%p1324) target = $region40
    $region39: #{down_block.6} parent=5 // pred_region
      %s1327 = ssub.s32 %s10, 2
      // Predicated region
      $region41: #{down_block.6} parent=39 // pred_check
        %p1328 = pneg %p86
      $region42: #{down_block.6} parent=39 // pred_check_branch
        %1330 = sbr.rel (%p1328) target = $region44
      $region43: #{down_block.6} parent=39 // pred_region
        %p1331 = scmp.lt.s32.totalorder %s16, 1
        %s1332 = scalar_select %p1331, %s16, 1
        %s1333 = smul.addr %s1332, 2
        %s1334 = smul.addr %s1333, 4
        %s1335 = scalar_lea.vmem %s2, %s1334
      $region44: #{down_block.6} parent=39 // pred_fallthru
        _
      // Predicated region
      $region45: #{down_block.6} parent=39 // pred_check
        %p1336 = pneg %p112
      $region46: #{down_block.6} parent=39 // pred_check_branch
        %1338 = sbr.rel (%p1336) target = $region48
      $region47: #{down_block.6} parent=39 // pred_region
        %p1339 = scmp.lt.s32.totalorder %s16, 1
        %s1340 = scalar_select %p1339, %s16, 1
        %s1341 = smul.addr %s1340, 2
        %s1342 = smul.addr %s1341, 2
        %s1343 = scalar_lea.vmem %s3, %s1342
      $region48: #{down_block.6} parent=39 // pred_fallthru
        _
    $region40: #{down_block.6} parent=5 // pred_fallthru
      _
  $region6: #{down_block.6} parent=0 // loop_footer
    %s14 = sadd.s32 1, %s10
  $region7: #{down_block.6} parent=0 // loop_footer_branch
    %9 = sbr.rel target = $region3
  $region8: #{down_block.6} parent=0 // loop_exit
    _

</llo_original>
